<compile_context>
chip_gen: v6e
topology: v6e:2x2x1
jax: 0.10.0
libtpu: 0.0.40
codegen_flags: <defaults>
</compile_context>

<pallas_src>
import functools

import jax
import jax.numpy as jnp
from jax import lax
from jax.experimental import pallas as pl
from jax.experimental.pallas import tpu as pltpu

GN_GROUPS = 32
GN_EPS = 1e-5


def _bilinear_matrix(n_in: int, n_out: int) -> jnp.ndarray:
    """Interpolation matrix A (n_out, n_in): bilinear, align_corners=True."""
    if n_in == 1:
        return jnp.ones((n_out, 1), jnp.float32)
    if n_out == 1:
        return jnp.zeros((1, n_in), jnp.float32).at[0, 0].set(1.0)
    i = jnp.arange(n_out, dtype=jnp.float32)
    src = i * (n_in - 1) / (n_out - 1)
    i0 = jnp.floor(src).astype(jnp.int32)
    i1 = jnp.minimum(i0 + 1, n_in - 1)
    w1 = src - i0.astype(jnp.float32)
    w0 = 1.0 - w1
    rows = jnp.arange(n_out)
    a = jnp.zeros((n_out, n_in), jnp.float32)
    a = a.at[rows, i0].add(w0)
    a = a.at[rows, i1].add(w1)
    return a


def _make_kernel(H, W, Cin, Cout, groups, eps, use_up_sample):
    cg = Cout // groups
    HW = H * W
    W_out = 2 * W
    inv_n = 1.0 / float(HW * cg)

    def gn_relu(acc, gamma_ref, beta_ref):
        # acc: (HW, Cout) f32 conv output.  One pass for sum / sum-of-squares.
        # (E[x^2]-E[x]^2 in f32: fine at these scales; clamp guards cancellation.)
        ch_sum = jnp.sum(acc, axis=0, keepdims=True)               # (1, Cout)
        ch_ssq = jnp.sum(acc * acc, axis=0, keepdims=True)         # (1, Cout)
        if cg == 1:
            c_mean = ch_sum * inv_n
            var = ch_ssq * inv_n - c_mean * c_mean
            c_rstd = lax.rsqrt(jnp.maximum(var, 0.0) + eps)
        else:
            # tiny one-hot channel<->group matmuls; avoids reshaping `acc`
            gsel = (lax.broadcasted_iota(jnp.int32, (Cout, groups), 0) // cg ==
                    lax.broadcasted_iota(jnp.int32, (Cout, groups), 1)
                    ).astype(jnp.float32)                          # (Cout, G)
            gbrd = (lax.broadcasted_iota(jnp.int32, (groups, Cout), 1) // cg ==
                    lax.broadcasted_iota(jnp.int32, (groups, Cout), 0)
                    ).astype(jnp.float32)                          # (G, Cout)
            g_mean = jnp.dot(ch_sum, gsel,
                             preferred_element_type=jnp.float32) * inv_n
            g_msq = jnp.dot(ch_ssq, gsel,
                            preferred_element_type=jnp.float32) * inv_n
            g_rstd = lax.rsqrt(jnp.maximum(g_msq - g_mean * g_mean, 0.0) + eps)
            c_mean = jnp.dot(g_mean, gbrd, preferred_element_type=jnp.float32)
            c_rstd = jnp.dot(g_rstd, gbrd, preferred_element_type=jnp.float32)
        scale = c_rstd * gamma_ref[...]                            # (1, Cout)
        shift = beta_ref[...] - c_mean * scale
        return jnp.maximum(acc * scale + shift, 0.0)               # (HW, Cout)

    if use_up_sample:
        def kernel(p_ref, w_ref, gamma_ref, beta_ref, awb_ref, ah_ref, o_ref):
            # conv as one im2col matmul: (HW, 9*Cin) @ (9*Cin, Cout), bf16->f32
            acc = jnp.dot(p_ref[...], w_ref[...],
                          preferred_element_type=jnp.float32)
            y = gn_relu(acc, gamma_ref, beta_ref)                  # (HW, Cout) f32
            # free reshape (split leading dim): (HW, C) -> (H, W, C)
            y3 = y.astype(jnp.bfloat16).reshape(H, W, Cout)
            # W interpolation: out[h,q,c] = sum_w aw[q,w] * y[h,w,c]
            # batched matmul over H (batch), K = W, N = Cout (stays on lanes)
            zq = jnp.einsum("hqw,hwc->hqc", awb_ref[...], y3,
                            preferred_element_type=jnp.float32)    # (H, W_out, C)
            # single relayout of the small intermediate -> lane-fused rows
            zq2 = zq.astype(jnp.bfloat16).reshape(H, W_out * Cout)
            # H interpolation lands directly in the lane-dense output block
            o_ref[...] = jnp.dot(ah_ref[...], zq2,
                                 preferred_element_type=jnp.float32
                                 ).astype(o_ref.dtype)             # (H_out, W_out*C)
        return kernel
    else:
        def kernel(p_ref, w_ref, gamma_ref, beta_ref, o_ref):
            acc = jnp.dot(p_ref[...], w_ref[...],
                          preferred_element_type=jnp.float32)
            y = gn_relu(acc, gamma_ref, beta_ref)                  # (HW, Cout)
            o_ref[...] = y.astype(o_ref.dtype).reshape(H, W * Cout)
        return kernel


@functools.partial(jax.jit, static_argnames=("use_up_sample", "out_dtype"))
def conv_gn_relu(x_nhwc, conv_w, gamma, beta, *, use_up_sample: bool,
                 out_dtype=jnp.float32):
    """One ConvGnReLU block.

    x_nhwc: (N, H, W, Cin) f32 or bf16.
    Returns lane-dense (N, H_out, W_out * Cout) in `out_dtype`.
    """
    N, H, W, Cin = x_nhwc.shape
    Cout = conv_w.shape[0]
    assert Cout % GN_GROUPS == 0, "GroupNorm(32, C) needs C % 32 == 0"
    H_out = 2 * H if use_up_sample else H
    W_out = 2 * W if use_up_sample else W
    HW = H * W

    # wrapper-side pad + im2col: 9 shifted taps -> (N, H*W, 9*Cin) bf16 slab.
    xb = x_nhwc.astype(jnp.bfloat16)
    xp = jnp.pad(xb, ((0, 0), (1, 1), (1, 1), (0, 0)))
    taps = [xp[:, dy:dy + H, dx:dx + W, :] for dy in range(3) for dx in range(3)]
    patches = jnp.concatenate(taps, axis=-1).reshape(N, HW, 9 * Cin)

    # conv weight -> (9*Cin, Cout); row = ky*3*Cin + kx*Cin + cin (matches patches)
    w_flat = jnp.transpose(conv_w, (2, 3, 1, 0)).reshape(9 * Cin, Cout)
    w_flat = w_flat.astype(jnp.bfloat16)
    gamma2 = gamma.reshape(1, Cout).astype(jnp.float32)
    beta2 = beta.reshape(1, Cout).astype(jnp.float32)

    in_specs = [
        pl.BlockSpec((None, HW, 9 * Cin), lambda n: (n, 0, 0)),
        pl.BlockSpec((9 * Cin, Cout), lambda n: (0, 0)),
        pl.BlockSpec((1, Cout), lambda n: (0, 0)),
        pl.BlockSpec((1, Cout), lambda n: (0, 0)),
    ]
    args = [patches, w_flat, gamma2, beta2]
    ups_bytes = 0
    if use_up_sample:
        ah = _bilinear_matrix(H, H_out).astype(jnp.bfloat16)       # (H_out, H)
        aw = _bilinear_matrix(W, W_out).astype(jnp.bfloat16)       # (W_out, W)
        awb = jnp.broadcast_to(aw[None], (H, W_out, W))            # batched lhs
        in_specs += [
            pl.BlockSpec((H, W_out, W), lambda n: (0, 0, 0)),
            pl.BlockSpec((H_out, H), lambda n: (0, 0)),
        ]
        args += [awb, ah]
        ups_bytes = (2 * (H * W_out * W + H_out * H) * 2           # awb / ah blocks
                     + H * W_out * Cout * (4 + 2)                  # zq f32 + bf16
                     + H_out * W_out * Cout * 4)                   # pre-cast result

    kernel = _make_kernel(H, W, Cin, Cout, GN_GROUPS, GN_EPS, use_up_sample)

    out_bytes = 2 if out_dtype == jnp.bfloat16 else 4
    est = (2 * HW * 9 * Cin * 2                      # patches block (bf16, x2 buf)
           + 2 * 9 * Cin * Cout * 2                  # weight (bf16, x2 buf)
           + 2 * 2 * Cout * 4 * 2                    # gamma / beta
           + 2 * H_out * W_out * Cout * out_bytes    # output block (x2 buf)
           + HW * Cout * (4 + 2)                     # conv acc f32 + bf16 copy
           + ups_bytes)
    vmem_limit = int(min(max(2 * est, 32 * 1024 * 1024), 48 * 1024 * 1024))

    out = pl.pallas_call(
        kernel,
        out_shape=jax.ShapeDtypeStruct((N, H_out, W_out * Cout), out_dtype),
        grid_spec=pltpu.PrefetchScalarGridSpec(
            num_scalar_prefetch=0,
            grid=(N,),
            in_specs=in_specs,
            out_specs=pl.BlockSpec((None, H_out, W_out * Cout),
                                   lambda n: (n, 0, 0)),
        ),
        compiler_params=pltpu.CompilerParams(
            dimension_semantics=("parallel",),
            vmem_limit_bytes=vmem_limit),
    )(*args)
    # TODO(synk): for real decoder sizes on v7x (64 MiB VMEM) add an H-band grid
    # axis (band + 1-row halo, accumulate-then-finalize GroupNorm) and stack
    # images along the M=H*W axis so the MXU / both TensorCores stay busy at
    # small N; at these decoder sizes one image per grid step fits comfortably.
    return out


def segmentation_block(x_nchw, params, up_sample_num: int):
    """SegmentationBlock: chain of ConvGnReLU kernels.

    params: list of (conv_w (Cout, Cin, 3, 3), gamma (Cout,), beta (Cout,)).
    Activations stay lane-dense bf16 between blocks; NCHW f32 only at the exit.
    """
    act = jnp.transpose(x_nchw, (0, 2, 3, 1))            # NHWC
    n_blocks = len(params)
    for i, (w, g, b) in enumerate(params):
        use_up = bool(up_sample_num) if i == 0 else True
        last = i == n_blocks - 1
        out = conv_gn_relu(act, w, g, b, use_up_sample=use_up,
                           out_dtype=jnp.float32 if last else jnp.bfloat16)
        cout = w.shape[0]
        n_, h_, wc = out.shape
        act = out.reshape(n_, h_, wc // cout, cout)       # NHWC view of the slab
    return jnp.transpose(act, (0, 3, 1, 2))               # NCHW f32


# ---------------------------- pure-JAX reference ----------------------------

def _reference_block(x_nchw, conv_w, gamma, beta, use_up_sample):
    x = jnp.transpose(x_nchw, (0, 2, 3, 1)).astype(jnp.float32)
    w_hwio = jnp.transpose(conv_w, (2, 3, 1, 0)).astype(jnp.float32)
    y = lax.conv_general_dilated(
        x, w_hwio, window_strides=(1, 1), padding=((1, 1), (1, 1)),
        dimension_numbers=("NHWC", "HWIO", "NHWC"))
    N, H, W, C = y.shape
    cg = C // GN_GROUPS
    yg = y.reshape(N, H, W, GN_GROUPS, cg)
    mean = yg.mean(axis=(1, 2, 4), keepdims=True)
    var = yg.var(axis=(1, 2, 4), keepdims=True)
    yn = (yg - mean) / jnp.sqrt(var + GN_EPS)
    yn = yn.reshape(N, H, W, C) * gamma.reshape(1, 1, 1, C) + beta.reshape(1, 1, 1, C)
    yn = jnp.maximum(yn, 0.0)
    if use_up_sample:
        ah = _bilinear_matrix(H, 2 * H)
        aw = _bilinear_matrix(W, 2 * W)
        yn = jnp.einsum("ph,nhwc->npwc", ah, yn)
        yn = jnp.einsum("qw,npwc->npqc", aw, yn)
    return jnp.transpose(yn, (0, 3, 1, 2))


def _reference_seg(x_nchw, params, up_sample_num):
    out = x_nchw
    for i, (w, g, b) in enumerate(params):
        use_up = bool(up_sample_num) if i == 0 else True
        out = _reference_block(out, w, g, b, use_up)
    return out


if __name__ == "__main__":
    N, inner_dim, H, W = 2, 4, 16, 16
    out_dim = 32               # GroupNorm(32, out_dim) needs out_dim % 32 == 0
    up_sample_num = 2

    key = jax.random.PRNGKey(0)
    n_blocks = max(up_sample_num, 1)
    keys = jax.random.split(key, 1 + 3 * n_blocks)
    x = jax.random.normal(keys[0], (N, inner_dim, H, W), jnp.float32)

    params = []
    cin = inner_dim
    for i in range(n_blocks):
        kw, kg, kb = keys[1 + 3 * i], keys[2 + 3 * i], keys[3 + 3 * i]
        w = jax.random.normal(kw, (out_dim, cin, 3, 3), jnp.float32) * 0.1
        g = 1.0 + 0.1 * jax.random.normal(kg, (out_dim,), jnp.float32)
        b = 0.1 * jax.random.normal(kb, (out_dim,), jnp.float32)
        params.append((w, g, b))
        cin = out_dim

    # SegmentationBlock with two x2-upsampling ConvGnReLU blocks
    out = jax.block_until_ready(segmentation_block(x, params, up_sample_num))
    ref = _reference_seg(x, params, up_sample_num)
    assert out.shape == ref.shape == (N, out_dim, 4 * H, 4 * W), (out.shape, ref.shape)
    err_max = float(jnp.max(jnp.abs(out - ref)))
    err_mean = float(jnp.mean(jnp.abs(out - ref)))
    # bf16 patches / weights / interp matrices across a 2-block chain vs the
    # f32 reference -> ~1e-2-scale deviations; a real indexing/GN bug would be O(1).
    assert err_max < 2e-1 and err_mean < 3e-2, (err_max, err_mean)

    # also exercise the no-upsample kernel variant (up_sample_num == 0)
    out0 = jax.block_until_ready(segmentation_block(x, params[:1], 0))
    ref0 = _reference_seg(x, params[:1], 0)
    assert out0.shape == ref0.shape == (N, out_dim, H, W), (out0.shape, ref0.shape)
    err0 = float(jnp.max(jnp.abs(out0 - ref0)))
    assert err0 < 1e-1, f"max abs error too large (no upsample): {err0}"

    print("KERNEL_OK")
</pallas_src>

<mosaic_0001>
module attributes {stable_mosaic.version = 11 : i64} {
  func.func private @main(%arg0: i32) attributes {dimension_semantics = [#tpu.dimension_semantics<core_parallel>], iteration_bounds = array<i64: 2>, tpu.core_type = #tpu.core_type<sc_scalar_subcore>, window_params = []} {
    return
  }
}

module attributes {stable_mosaic.version = 11 : i64} {
  func.func private @main(%arg0: i32) attributes {dimension_semantics = [#tpu.dimension_semantics<core_parallel>], iteration_bounds = array<i64: 2>, tpu.core_type = #tpu.core_type<sc_scalar_subcore>, window_params = []} {
    return
  }
}

module attributes {stable_mosaic.version = 11 : i64} {
  func.func @kernel(%arg0: i32, %arg1: memref<1x256x36xbf16, #tpu.memory_space<vmem>>, %arg2: memref<36x32xbf16, #tpu.memory_space<vmem>>, %arg3: memref<1x32xf32, #tpu.memory_space<vmem>>, %arg4: memref<1x32xf32, #tpu.memory_space<vmem>>, %arg5: memref<16x32x16xbf16, #tpu.memory_space<vmem>>, %arg6: memref<32x16xbf16, #tpu.memory_space<vmem>>, %arg7: memref<1x32x1024xbf16, #tpu.memory_space<vmem>>) attributes {dimension_semantics = [#tpu.dimension_semantics<parallel>], iteration_bounds = array<i64: 2>, scalar_prefetch = 0 : i64, scratch_operands = 0 : i64, tpu.core_type = #tpu.core_type<tc>, window_params = [{transform_indices = @transform_0, window_bounds = array<i64: 1, 256, 36>}, {pipeline_mode = #tpu.pipeline_mode<synchronous>, transform_indices = @transform_1, window_bounds = array<i64: 36, 32>}, {pipeline_mode = #tpu.pipeline_mode<synchronous>, transform_indices = @transform_2, window_bounds = array<i64: 1, 32>}, {pipeline_mode = #tpu.pipeline_mode<synchronous>, transform_indices = @transform_3, window_bounds = array<i64: 1, 32>}, {pipeline_mode = #tpu.pipeline_mode<synchronous>, transform_indices = @transform_4, window_bounds = array<i64: 16, 32, 16>}, {pipeline_mode = #tpu.pipeline_mode<synchronous>, transform_indices = @transform_5, window_bounds = array<i64: 32, 16>}, {transform_indices = @transform_6, window_bounds = array<i64: 1, 32, 1024>}]} {
    %c0 = arith.constant 0 : index
    %c0_0 = arith.constant 0 : index
    %c0_1 = arith.constant 0 : index
    %0 = vector.load %arg1[%c0, %c0_0, %c0_1] : memref<1x256x36xbf16, #tpu.memory_space<vmem>>, vector<1x256x36xbf16>
    %1 = vector.shape_cast %0 : vector<1x256x36xbf16> to vector<256x36xbf16>
    %c0_2 = arith.constant 0 : index
    %c0_3 = arith.constant 0 : index
    %2 = vector.load %arg2[%c0_2, %c0_3] : memref<36x32xbf16, #tpu.memory_space<vmem>>, vector<36x32xbf16>
    %cst = arith.constant dense<0.000000e+00> : vector<256x32xf32>
    %3 = tpu.matmul %1, %2, %cst {dimension_numbers = #tpu.dot_dimension_numbers<[1], [0], [0], [1], [0, 0, 1, 1], [], []>} : vector<256x36xbf16>, vector<36x32xbf16>, vector<256x32xf32> -> vector<256x32xf32>
    %cst_4 = arith.constant dense<0.000000e+00> : vector<32xf32>
    %4 = vector.multi_reduction <add>, %3, %cst_4 [0] : vector<256x32xf32> to vector<32xf32>
    %5 = vector.shape_cast %4 : vector<32xf32> to vector<1x32xf32>
    %6 = arith.mulf %3, %3 : vector<256x32xf32>
    %cst_5 = arith.constant dense<0.000000e+00> : vector<32xf32>
    %7 = vector.multi_reduction <add>, %6, %cst_5 [0] : vector<256x32xf32> to vector<32xf32>
    %8 = vector.shape_cast %7 : vector<32xf32> to vector<1x32xf32>
    %cst_6 = arith.constant 3.906250e-03 : f32
    %9 = vector.broadcast %cst_6 : f32 to vector<1x32xf32>
    %10 = arith.mulf %5, %9 : vector<1x32xf32>
    %cst_7 = arith.constant 3.906250e-03 : f32
    %11 = vector.broadcast %cst_7 : f32 to vector<1x32xf32>
    %12 = arith.mulf %8, %11 : vector<1x32xf32>
    %13 = arith.mulf %10, %10 : vector<1x32xf32>
    %14 = arith.subf %12, %13 : vector<1x32xf32>
    %cst_8 = arith.constant 0.000000e+00 : f32
    %15 = vector.broadcast %cst_8 : f32 to vector<1x32xf32>
    %16 = arith.maximumf %14, %15 : vector<1x32xf32>
    %cst_9 = arith.constant 9.99999974E-6 : f32
    %17 = vector.broadcast %cst_9 : f32 to vector<1x32xf32>
    %18 = arith.addf %16, %17 : vector<1x32xf32>
    %19 = math.rsqrt %18 : vector<1x32xf32>
    %c0_10 = arith.constant 0 : index
    %c0_11 = arith.constant 0 : index
    %20 = vector.load %arg3[%c0_10, %c0_11] : memref<1x32xf32, #tpu.memory_space<vmem>>, vector<1x32xf32>
    %21 = arith.mulf %19, %20 : vector<1x32xf32>
    %c0_12 = arith.constant 0 : index
    %c0_13 = arith.constant 0 : index
    %22 = vector.load %arg4[%c0_12, %c0_13] : memref<1x32xf32, #tpu.memory_space<vmem>>, vector<1x32xf32>
    %23 = arith.mulf %10, %21 : vector<1x32xf32>
    %24 = arith.subf %22, %23 : vector<1x32xf32>
    %25 = vector.broadcast %21 : vector<1x32xf32> to vector<256x32xf32>
    %26 = arith.mulf %3, %25 : vector<256x32xf32>
    %27 = vector.broadcast %24 : vector<1x32xf32> to vector<256x32xf32>
    %28 = arith.addf %26, %27 : vector<256x32xf32>
    %cst_14 = arith.constant 0.000000e+00 : f32
    %29 = vector.broadcast %cst_14 : f32 to vector<256x32xf32>
    %30 = arith.maximumf %28, %29 : vector<256x32xf32>
    %31 = arith.truncf %30 : vector<256x32xf32> to vector<256x32xbf16>
    %32 = vector.shape_cast %31 : vector<256x32xbf16> to vector<16x16x32xbf16>
    %c0_15 = arith.constant 0 : index
    %c0_16 = arith.constant 0 : index
    %c0_17 = arith.constant 0 : index
    %33 = vector.load %arg5[%c0_15, %c0_16, %c0_17] : memref<16x32x16xbf16, #tpu.memory_space<vmem>>, vector<16x32x16xbf16>
    "tpu.trace_start"() <{level = 10 : i32, message = "hqw,hwc->hqc"}> : () -> ()
    %cst_18 = arith.constant dense<0.000000e+00> : vector<16x32x32xf32>
    %34 = tpu.matmul %33, %32, %cst_18 {dimension_numbers = #tpu.dot_dimension_numbers<[2], [1], [1], [2], [0, 0, 0, 1, 1, 2], [0], [0]>} : vector<16x32x16xbf16>, vector<16x16x32xbf16>, vector<16x32x32xf32> -> vector<16x32x32xf32>
    "tpu.trace_stop"() : () -> ()
    %35 = arith.truncf %34 : vector<16x32x32xf32> to vector<16x32x32xbf16>
    %36 = vector.shape_cast %35 : vector<16x32x32xbf16> to vector<16x1024xbf16>
    %c0_19 = arith.constant 0 : index
    %c0_20 = arith.constant 0 : index
    %37 = vector.load %arg6[%c0_19, %c0_20] : memref<32x16xbf16, #tpu.memory_space<vmem>>, vector<32x16xbf16>
    %cst_21 = arith.constant dense<0.000000e+00> : vector<32x1024xf32>
    %38 = tpu.matmul %37, %36, %cst_21 {dimension_numbers = #tpu.dot_dimension_numbers<[1], [0], [0], [1], [0, 0, 1, 1], [], []>} : vector<32x16xbf16>, vector<16x1024xbf16>, vector<32x1024xf32> -> vector<32x1024xf32>
    %39 = arith.truncf %38 : vector<32x1024xf32> to vector<32x1024xbf16>
    %c0_22 = arith.constant 0 : index
    %c0_23 = arith.constant 0 : index
    %c0_24 = arith.constant 0 : index
    %40 = vector.load %arg7[%c0_22, %c0_23, %c0_24] : memref<1x32x1024xbf16, #tpu.memory_space<vmem>>, vector<1x32x1024xbf16>
    %41 = vector.shape_cast %40 : vector<1x32x1024xbf16> to vector<32x1024xbf16>
    %42 = vector.shape_cast %39 : vector<32x1024xbf16> to vector<1x32x1024xbf16>
    tpu.vector_store %arg7[%c0_22, %c0_23, %c0_24], %42 {strides = array<i32>} : memref<1x32x1024xbf16, #tpu.memory_space<vmem>>, vector<1x32x1024xbf16>,
    return
  }
  func.func @transform_0(%arg0: i32) -> (i32, i32, i32) {
    %c0_i32 = arith.constant 0 : i32
    %c0_i32_0 = arith.constant 0 : i32
    %c0_i32_1 = arith.constant 0 : i32
    return %arg0, %c0_i32, %c0_i32_0 : i32, i32, i32
  }
  func.func @transform_1(%arg0: i32) -> (i32, i32) {
    %c0_i32 = arith.constant 0 : i32
    %c0_i32_0 = arith.constant 0 : i32
    %c0_i32_1 = arith.constant 0 : i32
    return %c0_i32, %c0_i32_0 : i32, i32
  }
  func.func @transform_2(%arg0: i32) -> (i32, i32) {
    %c0_i32 = arith.constant 0 : i32
    %c0_i32_0 = arith.constant 0 : i32
    %c0_i32_1 = arith.constant 0 : i32
    return %c0_i32, %c0_i32_0 : i32, i32
  }
  func.func @transform_3(%arg0: i32) -> (i32, i32) {
    %c0_i32 = arith.constant 0 : i32
    %c0_i32_0 = arith.constant 0 : i32
    %c0_i32_1 = arith.constant 0 : i32
    return %c0_i32, %c0_i32_0 : i32, i32
  }
  func.func @transform_4(%arg0: i32) -> (i32, i32, i32) {
    %c0_i32 = arith.constant 0 : i32
    %c0_i32_0 = arith.constant 0 : i32
    %c0_i32_1 = arith.constant 0 : i32
    %c0_i32_2 = arith.constant 0 : i32
    return %c0_i32, %c0_i32_0, %c0_i32_1 : i32, i32, i32
  }
  func.func @transform_5(%arg0: i32) -> (i32, i32) {
    %c0_i32 = arith.constant 0 : i32
    %c0_i32_0 = arith.constant 0 : i32
    %c0_i32_1 = arith.constant 0 : i32
    return %c0_i32, %c0_i32_0 : i32, i32
  }
  func.func @transform_6(%arg0: i32) -> (i32, i32, i32) {
    %c0_i32 = arith.constant 0 : i32
    %c0_i32_0 = arith.constant 0 : i32
    %c0_i32_1 = arith.constant 0 : i32
    return %arg0, %c0_i32, %c0_i32_0 : i32, i32, i32
  }
}

</mosaic_0001>

<llo_original>
// kernel: conv_gn_relu.1
$region0: #{conv_gn_relu.1}
  #allocation0 [shape = 'u32[]', space=smem, size = 0x4, offset = 0x4, fixed_abs, tag = 'smem constant byte address 0x4 - core index']
  #allocation1 [shape = 'u32[144,128]{1,0:T(1,128)}', space=vmem, size = 0x12000, scoped, tag = 'internal scratch']
  %s0 = inlined_call_operand.vmem [shape: bf16[2,256,36], index: 0, kind: input, shape index: {}]
  %s1 = inlined_call_operand.vmem [shape: bf16[36,32], index: 1, kind: input, shape index: {}]
  %s2 = inlined_call_operand.vmem [shape: f32[1,32], index: 2, kind: input, shape index: {}]
  %s3 = inlined_call_operand.vmem [shape: f32[1,32], index: 3, kind: input, shape index: {}]
  %s4 = inlined_call_operand.vmem [shape: bf16[16,32,16], index: 4, kind: input, shape index: {}]
  %s5 = inlined_call_operand.vmem [shape: bf16[32,16], index: 5, kind: input, shape index: {}]
  %s6 = inlined_call_operand.hbm [shape: bf16[2,32,1024], index: 6, kind: output, shape index: {}]
  %s7 = sld [smem:[#allocation0]]
  $region57: #{conv_gn_relu.1} parent=0
    _
  %s9 = ssub.s32 1, %s7
  %s10 = scalar_select 0, %s9, %s7
  $region1: #{conv_gn_relu.1} parent=0
    #allocation2 [shape = 'u8[131072]{0}', space=vmem, size = 0x20000, scoped, tag = 'output window, operand 0']
    #allocation3 [shape = 's32[2]{0}', space=sflag, size = 0x8, scoped, tag = 'scoped memory for conv_gn_relu.1']
    %11 = vsyncpa [#allocation3], 0
    %s12 = scalar_lea.sflag [#allocation3], 1
    %13 = vsyncpa %s12, 0
    loop: start=0, step=1, limit=4
    $region2: #{conv_gn_relu.1} parent=1 // loop_pre_header
      _
    $region3: #{conv_gn_relu.1} parent=1 // loop_header
      %s15 = sphi 0, %s19
      %p16 = scmp.ge.s32.totalorder %s15, 4
      %s25 = sphi 0, %s27
      %s28 = sphi 0, %s25
      %s29 = sphi 0, %s28
      %s45 = sphi 0, %s29
      %s49 = sphi 0, %s49
      %s51 = sphi 0, %s49
      %s52 = sphi 0, %s51
      %s66 = sphi 0, %s52
      %s70 = sphi 0, %s70
      %s72 = sphi 0, %s70
      %s73 = sphi 0, %s72
      %s87 = sphi 0, %s73
      %s91 = sphi 0, %s91
      %s93 = sphi 0, %s91
      %s94 = sphi 0, %s93
      %s108 = sphi 0, %s94
      %s112 = sphi 0, %s112
      %s114 = sphi 0, %s112
      %s115 = sphi 0, %s114
      %s129 = sphi 0, %s115
      %s133 = sphi 0, %s133
      %s135 = sphi 0, %s133
      %s136 = sphi 0, %s135
      %s150 = sphi 0, %s136
      %s156 = sphi 0, %s158
      %s159 = sphi 0, %s156
      %s160 = sphi 0, %s159
      %s176 = sphi 0, %s160
    $region4: #{conv_gn_relu.1} parent=1 // loop_header_branch
      %18 = sbr.rel (%p16) target = $region8
    $region5: #{conv_gn_relu.1} parent=1 // loop_body
      %s20 = ssub.s32 %s15, 1
      %s21 = ssub.s32 %s15, 2
      %s22 = sadd.s32 %s15, 1
      %s23 = ssub.s32 %s15, %s22
      %p24 = scmp.eq.s32.totalorder %s23, 0
      %s26 = sadd.s32 %s25, 1
      %s27 = scalar_select %p24, %s25, %s26
      %p30 = pneg %p24
      %p31 = scmp.eq.s32.totalorder %s15, 1
      %p32 = por %p30, %p31
      %p33 = scmp.ne.s32.totalorder %s25, %s28
      %p34 = scmp.eq.s32.totalorder %s15, 0
      %p35 = por %p33, %p34
      %p36 = scmp.ne.s32.totalorder %s25, %s28
      %p37 = scmp.eq.s32.totalorder %s20, 1
      %p38 = por %p36, %p37
      %p39 = scmp.ne.s32.totalorder %s28, %s29
      %p40 = scmp.eq.s32.totalorder %s20, 0
      %p41 = por %p39, %p40
      %p42 = scmp.ne.s32.totalorder %s28, %s29
      %p43 = scmp.eq.s32.totalorder %s21, 1
      %p44 = por %p42, %p43
      %p46 = scmp.ne.s32.totalorder %s29, %s45
      %p47 = scmp.eq.s32.totalorder %s21, 0
      %p48 = por %p46, %p47
      %s50 = sadd.s32 %s49, 1
      %p53 = scmp.eq.s32.totalorder %s15, 1
      %p54 = scmp.ne.s32.totalorder %s49, %s51
      %p55 = scmp.eq.s32.totalorder %s15, 0
      %p56 = por %p54, %p55
      %p57 = scmp.ne.s32.totalorder %s49, %s51
      %p58 = scmp.eq.s32.totalorder %s20, 1
      %p59 = por %p57, %p58
      %p60 = scmp.ne.s32.totalorder %s51, %s52
      %p61 = scmp.eq.s32.totalorder %s20, 0
      %p62 = por %p60, %p61
      %p63 = scmp.ne.s32.totalorder %s51, %s52
      %p64 = scmp.eq.s32.totalorder %s21, 1
      %p65 = por %p63, %p64
      %p67 = scmp.ne.s32.totalorder %s52, %s66
      %p68 = scmp.eq.s32.totalorder %s21, 0
      %p69 = por %p67, %p68
      %s71 = sadd.s32 %s70, 1
      %p74 = scmp.eq.s32.totalorder %s15, 1
      %p75 = scmp.ne.s32.totalorder %s70, %s72
      %p76 = scmp.eq.s32.totalorder %s15, 0
      %p77 = por %p75, %p76
      %p78 = scmp.ne.s32.totalorder %s70, %s72
      %p79 = scmp.eq.s32.totalorder %s20, 1
      %p80 = por %p78, %p79
      %p81 = scmp.ne.s32.totalorder %s72, %s73
      %p82 = scmp.eq.s32.totalorder %s20, 0
      %p83 = por %p81, %p82
      %p84 = scmp.ne.s32.totalorder %s72, %s73
      %p85 = scmp.eq.s32.totalorder %s21, 1
      %p86 = por %p84, %p85
      %p88 = scmp.ne.s32.totalorder %s73, %s87
      %p89 = scmp.eq.s32.totalorder %s21, 0
      %p90 = por %p88, %p89
      %s92 = sadd.s32 %s91, 1
      %p95 = scmp.eq.s32.totalorder %s15, 1
      %p96 = scmp.ne.s32.totalorder %s91, %s93
      %p97 = scmp.eq.s32.totalorder %s15, 0
      %p98 = por %p96, %p97
      %p99 = scmp.ne.s32.totalorder %s91, %s93
      %p100 = scmp.eq.s32.totalorder %s20, 1
      %p101 = por %p99, %p100
      %p102 = scmp.ne.s32.totalorder %s93, %s94
      %p103 = scmp.eq.s32.totalorder %s20, 0
      %p104 = por %p102, %p103
      %p105 = scmp.ne.s32.totalorder %s93, %s94
      %p106 = scmp.eq.s32.totalorder %s21, 1
      %p107 = por %p105, %p106
      %p109 = scmp.ne.s32.totalorder %s94, %s108
      %p110 = scmp.eq.s32.totalorder %s21, 0
      %p111 = por %p109, %p110
      %s113 = sadd.s32 %s112, 1
      %p116 = scmp.eq.s32.totalorder %s15, 1
      %p117 = scmp.ne.s32.totalorder %s112, %s114
      %p118 = scmp.eq.s32.totalorder %s15, 0
      %p119 = por %p117, %p118
      %p120 = scmp.ne.s32.totalorder %s112, %s114
      %p121 = scmp.eq.s32.totalorder %s20, 1
      %p122 = por %p120, %p121
      %p123 = scmp.ne.s32.totalorder %s114, %s115
      %p124 = scmp.eq.s32.totalorder %s20, 0
      %p125 = por %p123, %p124
      %p126 = scmp.ne.s32.totalorder %s114, %s115
      %p127 = scmp.eq.s32.totalorder %s21, 1
      %p128 = por %p126, %p127
      %p130 = scmp.ne.s32.totalorder %s115, %s129
      %p131 = scmp.eq.s32.totalorder %s21, 0
      %p132 = por %p130, %p131
      %s134 = sadd.s32 %s133, 1
      %p137 = scmp.eq.s32.totalorder %s15, 1
      %p138 = scmp.ne.s32.totalorder %s133, %s135
      %p139 = scmp.eq.s32.totalorder %s15, 0
      %p140 = por %p138, %p139
      %p141 = scmp.ne.s32.totalorder %s133, %s135
      %p142 = scmp.eq.s32.totalorder %s20, 1
      %p143 = por %p141, %p142
      %p144 = scmp.ne.s32.totalorder %s135, %s136
      %p145 = scmp.eq.s32.totalorder %s20, 0
      %p146 = por %p144, %p145
      %p147 = scmp.ne.s32.totalorder %s135, %s136
      %p148 = scmp.eq.s32.totalorder %s21, 1
      %p149 = por %p147, %p148
      %p151 = scmp.ne.s32.totalorder %s136, %s150
      %p152 = scmp.eq.s32.totalorder %s21, 0
      %p153 = por %p151, %p152
      %s154 = ssub.s32 %s15, %s22
      %p155 = scmp.eq.s32.totalorder %s154, 0
      %s157 = sadd.s32 %s156, 1
      %s158 = scalar_select %p155, %s156, %s157
      %p161 = pneg %p155
      %p162 = scmp.eq.s32.totalorder %s15, 1
      %p163 = por %p161, %p162
      %p164 = scmp.ne.s32.totalorder %s156, %s159
      %p165 = scmp.eq.s32.totalorder %s15, 0
      %p166 = por %p164, %p165
      %p167 = scmp.ne.s32.totalorder %s156, %s159
      %p168 = scmp.eq.s32.totalorder %s20, 1
      %p169 = por %p167, %p168
      %p170 = scmp.ne.s32.totalorder %s159, %s160
      %p171 = scmp.eq.s32.totalorder %s20, 0
      %p172 = por %p170, %p171
      %p173 = scmp.ne.s32.totalorder %s159, %s160
      %p174 = scmp.eq.s32.totalorder %s21, 1
      %p175 = por %p173, %p174
      %p177 = scmp.ne.s32.totalorder %s160, %s176
      %p178 = scmp.eq.s32.totalorder %s21, 0
      %p179 = por %p177, %p178
      %p180 = scmp.le.s32.totalorder 1, %s15
      %p181 = scmp.lt.s32.totalorder %s15, 3
      %p182 = pnand %p180, %p181
      %p183 = pneg %p182
      // Predicated region
      $region9: #{conv_gn_relu.1} parent=5 // pred_check
        _
      $region10: #{conv_gn_relu.1} parent=5 // pred_check_branch
        %185 = sbr.rel (%p182) target = $region12
      $region11: #{conv_gn_relu.1} parent=5 // pred_region
        %s186 = ssub.s32 %s15, 1
        // Predicated region
        $region13: #{conv_gn_relu.1} parent=11 // pred_check
          %p187 = pneg %p62
        $region14: #{conv_gn_relu.1} parent=11 // pred_check_branch
          %189 = sbr.rel (%p187) target = $region16
        $region15: #{conv_gn_relu.1} parent=11 // pred_region
          _
        $region16: #{conv_gn_relu.1} parent=11 // pred_fallthru
          _
        // Predicated region
        $region17: #{conv_gn_relu.1} parent=11 // pred_check
          %p190 = pneg %p83
        $region18: #{conv_gn_relu.1} parent=11 // pred_check_branch
          %192 = sbr.rel (%p190) target = $region20
        $region19: #{conv_gn_relu.1} parent=11 // pred_region
          _
        $region20: #{conv_gn_relu.1} parent=11 // pred_fallthru
          _
        // Predicated region
        $region21: #{conv_gn_relu.1} parent=11 // pred_check
          %p193 = pneg %p104
        $region22: #{conv_gn_relu.1} parent=11 // pred_check_branch
          %195 = sbr.rel (%p193) target = $region24
        $region23: #{conv_gn_relu.1} parent=11 // pred_region
          _
        $region24: #{conv_gn_relu.1} parent=11 // pred_fallthru
          _
        // Predicated region
        $region25: #{conv_gn_relu.1} parent=11 // pred_check
          %p196 = pneg %p125
        $region26: #{conv_gn_relu.1} parent=11 // pred_check_branch
          %198 = sbr.rel (%p196) target = $region28
        $region27: #{conv_gn_relu.1} parent=11 // pred_region
          _
        $region28: #{conv_gn_relu.1} parent=11 // pred_fallthru
          _
        // Predicated region
        $region29: #{conv_gn_relu.1} parent=11 // pred_check
          %p199 = pneg %p146
        $region30: #{conv_gn_relu.1} parent=11 // pred_check_branch
          %201 = sbr.rel (%p199) target = $region32
        $region31: #{conv_gn_relu.1} parent=11 // pred_region
          _
        $region32: #{conv_gn_relu.1} parent=11 // pred_fallthru
          _
      $region12: #{conv_gn_relu.1} parent=5 // pred_fallthru
        _
      %p202 = scmp.lt.s32.totalorder %s15, 2
      // Predicated region
      $region33: #{conv_gn_relu.1} parent=5 // pred_check
        %p203 = pneg %p202
      $region34: #{conv_gn_relu.1} parent=5 // pred_check_branch
        %205 = sbr.rel (%p203) target = $region36
      $region35: #{conv_gn_relu.1} parent=5 // pred_region
        // Predicated region
        $region37: #{conv_gn_relu.1} parent=35 // pred_check
          %p206 = pneg %p35
        $region38: #{conv_gn_relu.1} parent=35 // pred_check_branch
          %208 = sbr.rel (%p206) target = $region40
        $region39: #{conv_gn_relu.1} parent=35 // pred_region
          %p209 = scmp.lt.s32.totalorder %s15, 1
          %s210 = scalar_select %p209, %s15, 1
          %s211 = smul.addr %s210, 32
          %s212 = smul.addr %s211, 4
          %s213 = scalar_lea.vmem %s0, %s212
        $region40: #{conv_gn_relu.1} parent=35 // pred_fallthru
          _
      $region36: #{conv_gn_relu.1} parent=5 // pred_fallthru
        _
      %p214 = scmp.le.s32.totalorder 1, %s15
      %p215 = scmp.lt.s32.totalorder %s15, 3
      %p216 = pnand %p214, %p215
      %p217 = pneg %p216
      // Predicated region
      $region41: #{conv_gn_relu.1} parent=5 // pred_check
        _
      $region42: #{conv_gn_relu.1} parent=5 // pred_check_branch
        %219 = sbr.rel (%p216) target = $region44
      $region43: #{conv_gn_relu.1} parent=5 // pred_region
        %s220 = ssub.s32 %s15, 1
        %p221 = scmp.lt.s32.totalorder %s20, 1
        %s222 = scalar_select %p221, %s20, 1
        %s223 = smul.addr %s222, 32
        %s224 = smul.addr %s223, 4
        %s225 = scalar_lea.vmem %s0, %s224
        %p226 = pneg %p41
        %p227 = pneg %p38
        %p228 = pneg %p62
        %p229 = pneg %p59
        %p230 = pneg %p83
        %p231 = pneg %p80
        %p232 = pneg %p104
        %p233 = pneg %p101
        %p234 = pneg %p125
        %p235 = pneg %p122
        %p236 = pneg %p146
        %p237 = pneg %p143
        %p238 = pneg %p172
        %p239 = pneg %p169
        %s240 = sand.u32 %s159, 1
        %s241 = scalar_lea.sflag [#allocation3], %s240
        %s242 = sand.u32 %s159, 1
        %s243 = smul.addr %s242, 128
        %s244 = scalar_lea.vmem [#allocation2], %s243
        %p245 = scmp.lt.s32.totalorder %s20, 1
        %s246 = scalar_select %p245, %s20, 1
        %s247 = smul.addr %s246, 32
        %s248 = smul.addr %s247, 4
        %s249 = scalar_lea.vmem %s0, %s248
        %v251 = vld [vmem:[%s249] sm:$0xf]
        %v252 = vld [vmem:[%s249 + $0x4] sm:$0xf]
        %v253 = vld [vmem:[%s249 + $0x8] sm:$0xf]
        %v254 = vld [vmem:[%s249 + $0xc] sm:$0xf]
        %v255 = vld [vmem:[%s249 + $0x10] sm:$0xf]
        %v256 = vld [vmem:[%s249 + $0x14] sm:$0xf]
        %v257 = vld [vmem:[%s249 + $0x18] sm:$0xf]
        %v258 = vld [vmem:[%s249 + $0x1c] sm:$0xf]
        %v259 = vld [vmem:[%s249 + $0x20] sm:$0xf]
        %v260 = vld [vmem:[%s249 + $0x24] sm:$0xf]
        %v261 = vld [vmem:[%s249 + $0x28] sm:$0xf]
        %v262 = vld [vmem:[%s249 + $0x2c] sm:$0xf]
        %v263 = vld [vmem:[%s249 + $0x30] sm:$0xf]
        %v264 = vld [vmem:[%s249 + $0x34] sm:$0xf]
        %v265 = vld [vmem:[%s249 + $0x38] sm:$0xf]
        %v266 = vld [vmem:[%s249 + $0x3c] sm:$0xf]
        %v267 = vld [vmem:[%s249 + $0x40] sm:$0xf]
        %v268 = vld [vmem:[%s249 + $0x44] sm:$0xf]
        %v269 = vld [vmem:[%s249 + $0x48] sm:$0xf]
        %v270 = vld [vmem:[%s249 + $0x4c] sm:$0xf]
        %v271 = vld [vmem:[%s249 + $0x50] sm:$0xf]
        %v272 = vld [vmem:[%s249 + $0x54] sm:$0xf]
        %v273 = vld [vmem:[%s249 + $0x58] sm:$0xf]
        %v274 = vld [vmem:[%s249 + $0x5c] sm:$0xf]
        %v275 = vld [vmem:[%s249 + $0x60] sm:$0xf]
        %v276 = vld [vmem:[%s249 + $0x64] sm:$0xf]
        %v277 = vld [vmem:[%s249 + $0x68] sm:$0xf]
        %v278 = vld [vmem:[%s249 + $0x6c] sm:$0xf]
        %v279 = vld [vmem:[%s249 + $0x70] sm:$0xf]
        %v280 = vld [vmem:[%s249 + $0x74] sm:$0xf]
        %v281 = vld [vmem:[%s249 + $0x78] sm:$0xf]
        %v282 = vld [vmem:[%s249 + $0x7c] sm:$0xf]
        %v283 = vld [vmem:[%s1] sm:$0xf]
        %v284 = vld [vmem:[%s1 + $0x4] sm:$0xf]
        %v285 = vld [vmem:[%s1 + $0x8] sm:$0xf]
        %v286 = vld [vmem:[%s1 + $0xc] sm:$0xf]
        %v287 = vld [vmem:[%s1 + $0x10] sm:$0x3]
        %v320 = vunpack.c.l.b16 %v251
        %v321 = vunpack.c.l.b16 %v252
        %v322 = vunpack.c.l.b16 %v253
        %v323 = vunpack.c.l.b16 %v254
        %v324 = vunpack.c.l.b16 %v255
        %v325 = vunpack.c.l.b16 %v256
        %v326 = vunpack.c.l.b16 %v257
        %v327 = vunpack.c.l.b16 %v258
        %v328 = vunpack.c.l.b16 %v259
        %v329 = vunpack.c.l.b16 %v260
        %v330 = vunpack.c.l.b16 %v261
        %v331 = vunpack.c.l.b16 %v262
        %v332 = vunpack.c.l.b16 %v263
        %v333 = vunpack.c.l.b16 %v264
        %v334 = vunpack.c.l.b16 %v265
        %v335 = vunpack.c.l.b16 %v266
        %v336 = vunpack.c.l.b16 %v267
        %v337 = vunpack.c.l.b16 %v268
        %v338 = vunpack.c.l.b16 %v269
        %v339 = vunpack.c.l.b16 %v270
        %v340 = vunpack.c.l.b16 %v271
        %v341 = vunpack.c.l.b16 %v272
        %v342 = vunpack.c.l.b16 %v273
        %v343 = vunpack.c.l.b16 %v274
        %v344 = vunpack.c.l.b16 %v275
        %v345 = vunpack.c.l.b16 %v276
        %v346 = vunpack.c.l.b16 %v277
        %v347 = vunpack.c.l.b16 %v278
        %v348 = vunpack.c.l.b16 %v279
        %v349 = vunpack.c.l.b16 %v280
        %v350 = vunpack.c.l.b16 %v281
        %v351 = vunpack.c.l.b16 %v282
        %v352 = vpack.c.b16 %v321, %v320
        %v353 = vpack.c.b16 %v323, %v322
        %v354 = vpack.c.b16 %v325, %v324
        %v355 = vpack.c.b16 %v327, %v326
        %v356 = vpack.c.b16 %v329, %v328
        %v357 = vpack.c.b16 %v331, %v330
        %v358 = vpack.c.b16 %v333, %v332
        %v359 = vpack.c.b16 %v335, %v334
        %v360 = vpack.c.b16 %v337, %v336
        %v361 = vpack.c.b16 %v339, %v338
        %v362 = vpack.c.b16 %v341, %v340
        %v363 = vpack.c.b16 %v343, %v342
        %v364 = vpack.c.b16 %v345, %v344
        %v365 = vpack.c.b16 %v347, %v346
        %v366 = vpack.c.b16 %v349, %v348
        %v367 = vpack.c.b16 %v351, %v350
        %v373 = vunpack.c.l.b16 %v283
        %v374 = vunpack.c.l.b16 %v284
        %v375 = vunpack.c.l.b16 %v285
        %v376 = vunpack.c.l.b16 %v286
        %v377 = vunpack.c.l.b16 %v287
        %v378 = vpack.c.b16 %v374, %v373
        %v379 = vpack.c.b16 %v376, %v375
        %v380 = vpack.c.b16 %v377, %v377
        %vm383 = vcmask 293888
        %v385 = vsel %vm383, %v352, 0
        %v388 = vsel %vm383, %v353, 0
        %v391 = vsel %vm383, %v354, 0
        %v394 = vsel %vm383, %v355, 0
        %v397 = vsel %vm383, %v356, 0
        %v400 = vsel %vm383, %v357, 0
        %v403 = vsel %vm383, %v358, 0
        %v406 = vsel %vm383, %v359, 0
        %v409 = vsel %vm383, %v360, 0
        %v412 = vsel %vm383, %v361, 0
        %v415 = vsel %vm383, %v362, 0
        %v418 = vsel %vm383, %v363, 0
        %v421 = vsel %vm383, %v364, 0
        %v424 = vsel %vm383, %v365, 0
        %v427 = vsel %vm383, %v366, 0
        %v430 = vsel %vm383, %v367, 0
        %vm432 = vcmask 1041408
        %v434 = vsel %vm432, %v380, 0
        %436 = vmatprep.subr.bf16.mxu0 0
        %437 = vmatpush1.bf16.msra.mxu0 0
        %438 = vmatprep.subr.bf16.mxu0 0
        %439 = vmatpush1.bf16.msra.mxu0 0
        %440 = vmatprep.subr.bf16.mxu0 0
        %441 = vmatpush1.bf16.msra.mxu0 0
        %442 = vmatprep.subr.bf16.mxu0 0
        %443 = vmatpush1.bf16.msra.mxu0 0
        %444 = vmatprep.subr.bf16.mxu0 0
        %445 = vmatpush1.bf16.msra.mxu0 0
        %446 = vmatprep.subr.bf16.mxu0 0
        %447 = vmatpush1.bf16.msra.mxu0 %v434
        %448 = vmatprep.subr.bf16.mxu0 0
        %449 = vmatpush1.bf16.msra.mxu0 %v379
        %450 = vmatprep.subr.bf16.mxu0 0
        %451 = vmatpush1.bf16.msra.mxu0 %v378
        %452 = vmatprep.subr.bf16.mxu0 0
        %453 = vmatpush2.bf16.msra.mxu0 0
        %454 = vmatprep.subr.bf16.mxu0 0
        %455 = vmatpush2.bf16.msra.mxu0 0
        %456 = vmatprep.subr.bf16.mxu0 0
        %457 = vmatpush2.bf16.msra.mxu0 0
        %458 = vmatprep.subr.bf16.mxu0 0
        %459 = vmatpush2.bf16.msra.mxu0 0
        %460 = vmatprep.subr.bf16.mxu0 0
        %461 = vmatpush2.bf16.msra.mxu0 0
        %462 = vmatprep.subr.bf16.mxu0 0
        %463 = vmatpush2.bf16.msra.mxu0 0
        %464 = vmatprep.subr.bf16.mxu0 0
        %465 = vmatpush2.bf16.msra.mxu0 0
        %466 = vmatprep.subr.bf16.mxu0 0
        %467 = vmatpush2.bf16.msra.mxu0 0
        %468 = vmatprep.mubr.bf16.mxu0 0
        %469 = vmatmul.mubr.bf16.gmra.mxu0 %v385
        %v470 = vpop.f32.mrf.mxu0
        %v471 = vadd.f32 0.0, %v470
        %v472 = vpop.f32.mrf.mxu0
        %v473 = vpop.f32.mrf.mxu0
        %v474 = vadd.f32 0.0, %v473
        %v475 = vpop.f32.mrf.mxu0
        %476 = vmatprep.mubr.bf16.mxu0 0
        %477 = vmatmul.mubr.bf16.gmra.mxu0 %v388
        %v478 = vpop.f32.mrf.mxu0
        %v479 = vadd.f32 0.0, %v478
        %v480 = vpop.f32.mrf.mxu0
        %v481 = vpop.f32.mrf.mxu0
        %v482 = vadd.f32 0.0, %v481
        %v483 = vpop.f32.mrf.mxu0
        %484 = vmatprep.mubr.bf16.mxu0 0
        %485 = vmatmul.mubr.bf16.gmra.mxu0 %v391
        %v486 = vpop.f32.mrf.mxu0
        %v487 = vadd.f32 0.0, %v486
        %v488 = vpop.f32.mrf.mxu0
        %v489 = vpop.f32.mrf.mxu0
        %v490 = vadd.f32 0.0, %v489
        %v491 = vpop.f32.mrf.mxu0
        %492 = vmatprep.mubr.bf16.mxu0 0
        %493 = vmatmul.mubr.bf16.gmra.mxu0 %v394
        %v494 = vpop.f32.mrf.mxu0
        %v495 = vadd.f32 0.0, %v494
        %v496 = vpop.f32.mrf.mxu0
        %v497 = vpop.f32.mrf.mxu0
        %v498 = vadd.f32 0.0, %v497
        %v499 = vpop.f32.mrf.mxu0
        %500 = vmatprep.mubr.bf16.mxu0 0
        %501 = vmatmul.mubr.bf16.gmra.mxu0 %v397
        %v502 = vpop.f32.mrf.mxu0
        %v503 = vadd.f32 0.0, %v502
        %v504 = vpop.f32.mrf.mxu0
        %v505 = vpop.f32.mrf.mxu0
        %v506 = vadd.f32 0.0, %v505
        %v507 = vpop.f32.mrf.mxu0
        %508 = vmatprep.mubr.bf16.mxu0 0
        %509 = vmatmul.mubr.bf16.gmra.mxu0 %v400
        %v510 = vpop.f32.mrf.mxu0
        %v511 = vadd.f32 0.0, %v510
        %v512 = vpop.f32.mrf.mxu0
        %v513 = vpop.f32.mrf.mxu0
        %v514 = vadd.f32 0.0, %v513
        %v515 = vpop.f32.mrf.mxu0
        %516 = vmatprep.mubr.bf16.mxu0 0
        %517 = vmatmul.mubr.bf16.gmra.mxu0 %v403
        %v518 = vpop.f32.mrf.mxu0
        %v519 = vadd.f32 0.0, %v518
        %v520 = vpop.f32.mrf.mxu0
        %v521 = vpop.f32.mrf.mxu0
        %v522 = vadd.f32 0.0, %v521
        %v523 = vpop.f32.mrf.mxu0
        %524 = vmatprep.mubr.bf16.mxu0 0
        %525 = vmatmul.mubr.bf16.gmra.mxu0 %v406
        %v526 = vpop.f32.mrf.mxu0
        %v527 = vadd.f32 0.0, %v526
        %v528 = vpop.f32.mrf.mxu0
        %v529 = vpop.f32.mrf.mxu0
        %v530 = vadd.f32 0.0, %v529
        %v531 = vpop.f32.mrf.mxu0
        %532 = vmatprep.mubr.bf16.mxu0 0
        %533 = vmatmul.mubr.bf16.gmra.mxu0 %v409
        %v534 = vpop.f32.mrf.mxu0
        %v535 = vadd.f32 0.0, %v534
        %v536 = vpop.f32.mrf.mxu0
        %v537 = vpop.f32.mrf.mxu0
        %v538 = vadd.f32 0.0, %v537
        %v539 = vpop.f32.mrf.mxu0
        %540 = vmatprep.mubr.bf16.mxu0 0
        %541 = vmatmul.mubr.bf16.gmra.mxu0 %v412
        %v542 = vpop.f32.mrf.mxu0
        %v543 = vadd.f32 0.0, %v542
        %v544 = vpop.f32.mrf.mxu0
        %v545 = vpop.f32.mrf.mxu0
        %v546 = vadd.f32 0.0, %v545
        %v547 = vpop.f32.mrf.mxu0
        %548 = vmatprep.mubr.bf16.mxu0 0
        %549 = vmatmul.mubr.bf16.gmra.mxu0 %v415
        %v550 = vpop.f32.mrf.mxu0
        %v551 = vadd.f32 0.0, %v550
        %v552 = vpop.f32.mrf.mxu0
        %v553 = vpop.f32.mrf.mxu0
        %v554 = vadd.f32 0.0, %v553
        %v555 = vpop.f32.mrf.mxu0
        %556 = vmatprep.mubr.bf16.mxu0 0
        %557 = vmatmul.mubr.bf16.gmra.mxu0 %v418
        %v558 = vpop.f32.mrf.mxu0
        %v559 = vadd.f32 0.0, %v558
        %v560 = vpop.f32.mrf.mxu0
        %v561 = vpop.f32.mrf.mxu0
        %v562 = vadd.f32 0.0, %v561
        %v563 = vpop.f32.mrf.mxu0
        %564 = vmatprep.mubr.bf16.mxu0 0
        %565 = vmatmul.mubr.bf16.gmra.mxu0 %v421
        %v566 = vpop.f32.mrf.mxu0
        %v567 = vadd.f32 0.0, %v566
        %v568 = vpop.f32.mrf.mxu0
        %v569 = vpop.f32.mrf.mxu0
        %v570 = vadd.f32 0.0, %v569
        %v571 = vpop.f32.mrf.mxu0
        %572 = vmatprep.mubr.bf16.mxu0 0
        %573 = vmatmul.mubr.bf16.gmra.mxu0 %v424
        %v574 = vpop.f32.mrf.mxu0
        %v575 = vadd.f32 0.0, %v574
        %v576 = vpop.f32.mrf.mxu0
        %v577 = vpop.f32.mrf.mxu0
        %v578 = vadd.f32 0.0, %v577
        %v579 = vpop.f32.mrf.mxu0
        %580 = vmatprep.mubr.bf16.mxu0 0
        %581 = vmatmul.mubr.bf16.gmra.mxu0 %v427
        %v582 = vpop.f32.mrf.mxu0
        %v583 = vadd.f32 0.0, %v582
        %v584 = vpop.f32.mrf.mxu0
        %v585 = vpop.f32.mrf.mxu0
        %v586 = vadd.f32 0.0, %v585
        %v587 = vpop.f32.mrf.mxu0
        %588 = vmatprep.mubr.bf16.mxu0 0
        %589 = vmatmul.mubr.bf16.gmra.mxu0 %v430
        %v590 = vpop.f32.mrf.mxu0
        %v591 = vadd.f32 0.0, %v590
        %v592 = vpop.f32.mrf.mxu0
        %v593 = vpop.f32.mrf.mxu0
        %v594 = vadd.f32 0.0, %v593
        %v595 = vpop.f32.mrf.mxu0
        %596 = vdwg.mxu0
        %vm597 = vcmask 261120
        %v598 = vsel %vm597, %v471, 0.0
        %v599 = vsel %vm597, %v474, 0.0
        %v600 = vadd.f32 %v598, %v599
        %v601 = vsel %vm597, %v479, 0.0
        %v602 = vadd.f32 %v600, %v601
        %v603 = vsel %vm597, %v482, 0.0
        %v604 = vadd.f32 %v602, %v603
        %v605 = vsel %vm597, %v487, 0.0
        %v606 = vadd.f32 %v604, %v605
        %v607 = vsel %vm597, %v490, 0.0
        %v608 = vadd.f32 %v606, %v607
        %v609 = vsel %vm597, %v495, 0.0
        %v610 = vadd.f32 %v608, %v609
        %v611 = vsel %vm597, %v498, 0.0
        %v612 = vadd.f32 %v610, %v611
        %v613 = vsel %vm597, %v503, 0.0
        %v614 = vadd.f32 %v612, %v613
        %v615 = vsel %vm597, %v506, 0.0
        %v616 = vadd.f32 %v614, %v615
        %v617 = vsel %vm597, %v511, 0.0
        %v618 = vadd.f32 %v616, %v617
        %v619 = vsel %vm597, %v514, 0.0
        %v620 = vadd.f32 %v618, %v619
        %v621 = vsel %vm597, %v519, 0.0
        %v622 = vadd.f32 %v620, %v621
        %v623 = vsel %vm597, %v522, 0.0
        %v624 = vadd.f32 %v622, %v623
        %v625 = vsel %vm597, %v527, 0.0
        %v626 = vadd.f32 %v624, %v625
        %v627 = vsel %vm597, %v530, 0.0
        %v628 = vadd.f32 %v626, %v627
        %v629 = vsel %vm597, %v535, 0.0
        %v630 = vadd.f32 %v628, %v629
        %v631 = vsel %vm597, %v538, 0.0
        %v632 = vadd.f32 %v630, %v631
        %v633 = vsel %vm597, %v543, 0.0
        %v634 = vadd.f32 %v632, %v633
        %v635 = vsel %vm597, %v546, 0.0
        %v636 = vadd.f32 %v634, %v635
        %v637 = vsel %vm597, %v551, 0.0
        %v638 = vadd.f32 %v636, %v637
        %v639 = vsel %vm597, %v554, 0.0
        %v640 = vadd.f32 %v638, %v639
        %v641 = vsel %vm597, %v559, 0.0
        %v642 = vadd.f32 %v640, %v641
        %v643 = vsel %vm597, %v562, 0.0
        %v644 = vadd.f32 %v642, %v643
        %v645 = vsel %vm597, %v567, 0.0
        %v646 = vadd.f32 %v644, %v645
        %v647 = vsel %vm597, %v570, 0.0
        %v648 = vadd.f32 %v646, %v647
        %v649 = vsel %vm597, %v575, 0.0
        %v650 = vadd.f32 %v648, %v649
        %v651 = vsel %vm597, %v578, 0.0
        %v652 = vadd.f32 %v650, %v651
        %v653 = vsel %vm597, %v583, 0.0
        %v654 = vadd.f32 %v652, %v653
        %v655 = vsel %vm597, %v586, 0.0
        %v656 = vadd.f32 %v654, %v655
        %v657 = vsel %vm597, %v591, 0.0
        %v658 = vadd.f32 %v656, %v657
        %v659 = vsel %vm597, %v594, 0.0
        %v660 = vadd.f32 %v658, %v659
        %v661 = vrot.slane %v660, 4
        %v662 = vadd.f32 %v660, %v661
        %v663 = vrot.slane %v662, 2
        %v664 = vadd.f32 %v662, %v663
        %v665 = vrot.slane %v664, 1
        %v666 = vadd.f32 %v664, %v665
        %v667 = vmul.f32 %v471, %v471
        %v668 = vmul.f32 %v474, %v474
        %v669 = vmul.f32 %v479, %v479
        %v670 = vmul.f32 %v482, %v482
        %v671 = vmul.f32 %v487, %v487
        %v672 = vmul.f32 %v490, %v490
        %v673 = vmul.f32 %v495, %v495
        %v674 = vmul.f32 %v498, %v498
        %v675 = vmul.f32 %v503, %v503
        %v676 = vmul.f32 %v506, %v506
        %v677 = vmul.f32 %v511, %v511
        %v678 = vmul.f32 %v514, %v514
        %v679 = vmul.f32 %v519, %v519
        %v680 = vmul.f32 %v522, %v522
        %v681 = vmul.f32 %v527, %v527
        %v682 = vmul.f32 %v530, %v530
        %v683 = vmul.f32 %v535, %v535
        %v684 = vmul.f32 %v538, %v538
        %v685 = vmul.f32 %v543, %v543
        %v686 = vmul.f32 %v546, %v546
        %v687 = vmul.f32 %v551, %v551
        %v688 = vmul.f32 %v554, %v554
        %v689 = vmul.f32 %v559, %v559
        %v690 = vmul.f32 %v562, %v562
        %v691 = vmul.f32 %v567, %v567
        %v692 = vmul.f32 %v570, %v570
        %v693 = vmul.f32 %v575, %v575
        %v694 = vmul.f32 %v578, %v578
        %v695 = vmul.f32 %v583, %v583
        %v696 = vmul.f32 %v586, %v586
        %v697 = vmul.f32 %v591, %v591
        %v698 = vmul.f32 %v594, %v594
        %v699 = vsel %vm597, %v667, 0.0
        %v700 = vsel %vm597, %v668, 0.0
        %v701 = vadd.f32 %v699, %v700
        %v702 = vsel %vm597, %v669, 0.0
        %v703 = vadd.f32 %v701, %v702
        %v704 = vsel %vm597, %v670, 0.0
        %v705 = vadd.f32 %v703, %v704
        %v706 = vsel %vm597, %v671, 0.0
        %v707 = vadd.f32 %v705, %v706
        %v708 = vsel %vm597, %v672, 0.0
        %v709 = vadd.f32 %v707, %v708
        %v710 = vsel %vm597, %v673, 0.0
        %v711 = vadd.f32 %v709, %v710
        %v712 = vsel %vm597, %v674, 0.0
        %v713 = vadd.f32 %v711, %v712
        %v714 = vsel %vm597, %v675, 0.0
        %v715 = vadd.f32 %v713, %v714
        %v716 = vsel %vm597, %v676, 0.0
        %v717 = vadd.f32 %v715, %v716
        %v718 = vsel %vm597, %v677, 0.0
        %v719 = vadd.f32 %v717, %v718
        %v720 = vsel %vm597, %v678, 0.0
        %v721 = vadd.f32 %v719, %v720
        %v722 = vsel %vm597, %v679, 0.0
        %v723 = vadd.f32 %v721, %v722
        %v724 = vsel %vm597, %v680, 0.0
        %v725 = vadd.f32 %v723, %v724
        %v726 = vsel %vm597, %v681, 0.0
        %v727 = vadd.f32 %v725, %v726
        %v728 = vsel %vm597, %v682, 0.0
        %v729 = vadd.f32 %v727, %v728
        %v730 = vsel %vm597, %v683, 0.0
        %v731 = vadd.f32 %v729, %v730
        %v732 = vsel %vm597, %v684, 0.0
        %v733 = vadd.f32 %v731, %v732
        %v734 = vsel %vm597, %v685, 0.0
        %v735 = vadd.f32 %v733, %v734
        %v736 = vsel %vm597, %v686, 0.0
        %v737 = vadd.f32 %v735, %v736
        %v738 = vsel %vm597, %v687, 0.0
        %v739 = vadd.f32 %v737, %v738
        %v740 = vsel %vm597, %v688, 0.0
        %v741 = vadd.f32 %v739, %v740
        %v742 = vsel %vm597, %v689, 0.0
        %v743 = vadd.f32 %v741, %v742
        %v744 = vsel %vm597, %v690, 0.0
        %v745 = vadd.f32 %v743, %v744
        %v746 = vsel %vm597, %v691, 0.0
        %v747 = vadd.f32 %v745, %v746
        %v748 = vsel %vm597, %v692, 0.0
        %v749 = vadd.f32 %v747, %v748
        %v750 = vsel %vm597, %v693, 0.0
        %v751 = vadd.f32 %v749, %v750
        %v752 = vsel %vm597, %v694, 0.0
        %v753 = vadd.f32 %v751, %v752
        %v754 = vsel %vm597, %v695, 0.0
        %v755 = vadd.f32 %v753, %v754
        %v756 = vsel %vm597, %v696, 0.0
        %v757 = vadd.f32 %v755, %v756
        %v758 = vsel %vm597, %v697, 0.0
        %v759 = vadd.f32 %v757, %v758
        %v760 = vsel %vm597, %v698, 0.0
        %v761 = vadd.f32 %v759, %v760
        %v762 = vrot.slane %v761, 4
        %v763 = vadd.f32 %v761, %v762
        %v764 = vrot.slane %v763, 2
        %v765 = vadd.f32 %v763, %v764
        %v766 = vrot.slane %v765, 1
        %v767 = vadd.f32 %v765, %v766
        %v768 = vmul.f32 %v666, 0.00390625
        %v769 = vmul.f32 %v767, 0.00390625
        %v770 = vmul.f32 %v768, %v768
        %v771 = vsub.f32 %v769, %v770
        %v772 = vmax.f32 %v771, 0.0
        %v773 = vadd.f32 %v772, 1e-05
        %v774 = vrsqrt.pop %v773
        %v775 = vld [vmem:[%s2] sm:$0x1]
        %v776 = vmul.f32 %v774, %v775
        %v777 = vld [vmem:[%s3] sm:$0x1]
        %v778 = vmul.f32 %v768, %v776
        %v779 = vsub.f32 %v777, %v778
        %v780 = vlaneseq
        %v781 = vshrl.u32 %v780, 7
        %v782 = vsub.s32 0, %v781
        %v783 = vrot.slane %v776, %v782
        %v784 = vmul.f32 %v471, %v783
        %v785 = vmul.f32 %v474, %v783
        %v786 = vmul.f32 %v479, %v783
        %v787 = vmul.f32 %v482, %v783
        %v788 = vmul.f32 %v487, %v783
        %v789 = vmul.f32 %v490, %v783
        %v790 = vmul.f32 %v495, %v783
        %v791 = vmul.f32 %v498, %v783
        %v792 = vmul.f32 %v503, %v783
        %v793 = vmul.f32 %v506, %v783
        %v794 = vmul.f32 %v511, %v783
        %v795 = vmul.f32 %v514, %v783
        %v796 = vmul.f32 %v519, %v783
        %v797 = vmul.f32 %v522, %v783
        %v798 = vmul.f32 %v527, %v783
        %v799 = vmul.f32 %v530, %v783
        %v800 = vmul.f32 %v535, %v783
        %v801 = vmul.f32 %v538, %v783
        %v802 = vmul.f32 %v543, %v783
        %v803 = vmul.f32 %v546, %v783
        %v804 = vmul.f32 %v551, %v783
        %v805 = vmul.f32 %v554, %v783
        %v806 = vmul.f32 %v559, %v783
        %v807 = vmul.f32 %v562, %v783
        %v808 = vmul.f32 %v567, %v783
        %v809 = vmul.f32 %v570, %v783
        %v810 = vmul.f32 %v575, %v783
        %v811 = vmul.f32 %v578, %v783
        %v812 = vmul.f32 %v583, %v783
        %v813 = vmul.f32 %v586, %v783
        %v814 = vmul.f32 %v591, %v783
        %v815 = vmul.f32 %v594, %v783
        %v817 = vlaneseq
        %v818 = vshrl.u32 %v817, 7
        %v819 = vsub.s32 0, %v818
        %v820 = vrot.slane %v779, %v819
        %v822 = vadd.f32 %v784, %v820
        %v823 = vadd.f32 %v785, %v820
        %v824 = vadd.f32 %v786, %v820
        %v825 = vadd.f32 %v787, %v820
        %v826 = vadd.f32 %v788, %v820
        %v827 = vadd.f32 %v789, %v820
        %v828 = vadd.f32 %v790, %v820
        %v829 = vadd.f32 %v791, %v820
        %v830 = vadd.f32 %v792, %v820
        %v831 = vadd.f32 %v793, %v820
        %v832 = vadd.f32 %v794, %v820
        %v833 = vadd.f32 %v795, %v820
        %v834 = vadd.f32 %v796, %v820
        %v835 = vadd.f32 %v797, %v820
        %v836 = vadd.f32 %v798, %v820
        %v837 = vadd.f32 %v799, %v820
        %v838 = vadd.f32 %v800, %v820
        %v839 = vadd.f32 %v801, %v820
        %v840 = vadd.f32 %v802, %v820
        %v841 = vadd.f32 %v803, %v820
        %v842 = vadd.f32 %v804, %v820
        %v843 = vadd.f32 %v805, %v820
        %v844 = vadd.f32 %v806, %v820
        %v845 = vadd.f32 %v807, %v820
        %v846 = vadd.f32 %v808, %v820
        %v847 = vadd.f32 %v809, %v820
        %v848 = vadd.f32 %v810, %v820
        %v849 = vadd.f32 %v811, %v820
        %v850 = vadd.f32 %v812, %v820
        %v851 = vadd.f32 %v813, %v820
        %v852 = vadd.f32 %v814, %v820
        %v853 = vadd.f32 %v815, %v820
        %v854 = vmax.f32 %v822, 0.0
        %v855 = vmax.f32 %v823, 0.0
        %v856 = vmax.f32 %v824, 0.0
        %v857 = vmax.f32 %v825, 0.0
        %v858 = vmax.f32 %v826, 0.0
        %v859 = vmax.f32 %v827, 0.0
        %v860 = vmax.f32 %v828, 0.0
        %v861 = vmax.f32 %v829, 0.0
        %v862 = vmax.f32 %v830, 0.0
        %v863 = vmax.f32 %v831, 0.0
        %v864 = vmax.f32 %v832, 0.0
        %v865 = vmax.f32 %v833, 0.0
        %v866 = vmax.f32 %v834, 0.0
        %v867 = vmax.f32 %v835, 0.0
        %v868 = vmax.f32 %v836, 0.0
        %v869 = vmax.f32 %v837, 0.0
        %v870 = vmax.f32 %v838, 0.0
        %v871 = vmax.f32 %v839, 0.0
        %v872 = vmax.f32 %v840, 0.0
        %v873 = vmax.f32 %v841, 0.0
        %v874 = vmax.f32 %v842, 0.0
        %v875 = vmax.f32 %v843, 0.0
        %v876 = vmax.f32 %v844, 0.0
        %v877 = vmax.f32 %v845, 0.0
        %v878 = vmax.f32 %v846, 0.0
        %v879 = vmax.f32 %v847, 0.0
        %v880 = vmax.f32 %v848, 0.0
        %v881 = vmax.f32 %v849, 0.0
        %v882 = vmax.f32 %v850, 0.0
        %v883 = vmax.f32 %v851, 0.0
        %v884 = vmax.f32 %v852, 0.0
        %v885 = vmax.f32 %v853, 0.0
        %v886 = vpack.c.bf16 %v855, %v854
        %v887 = vpack.c.bf16 %v857, %v856
        %v888 = vpack.c.bf16 %v859, %v858
        %v889 = vpack.c.bf16 %v861, %v860
        %v890 = vpack.c.bf16 %v863, %v862
        %v891 = vpack.c.bf16 %v865, %v864
        %v892 = vpack.c.bf16 %v867, %v866
        %v893 = vpack.c.bf16 %v869, %v868
        %v894 = vpack.c.bf16 %v871, %v870
        %v895 = vpack.c.bf16 %v873, %v872
        %v896 = vpack.c.bf16 %v875, %v874
        %v897 = vpack.c.bf16 %v877, %v876
        %v898 = vpack.c.bf16 %v879, %v878
        %v899 = vpack.c.bf16 %v881, %v880
        %v900 = vpack.c.bf16 %v883, %v882
        %v901 = vpack.c.bf16 %v885, %v884
        %v902 = vld [vmem:[%s4] sm:$0xf]
        %v903 = vld [vmem:[%s4 + $0x4] sm:$0xf]
        %v904 = vld [vmem:[%s4 + $0x8] sm:$0xf]
        %v905 = vld [vmem:[%s4 + $0xc] sm:$0xf]
        %v906 = vld [vmem:[%s4 + $0x10] sm:$0xf]
        %v907 = vld [vmem:[%s4 + $0x14] sm:$0xf]
        %v908 = vld [vmem:[%s4 + $0x18] sm:$0xf]
        %v909 = vld [vmem:[%s4 + $0x1c] sm:$0xf]
        %v910 = vld [vmem:[%s4 + $0x20] sm:$0xf]
        %v911 = vld [vmem:[%s4 + $0x24] sm:$0xf]
        %v912 = vld [vmem:[%s4 + $0x28] sm:$0xf]
        %v913 = vld [vmem:[%s4 + $0x2c] sm:$0xf]
        %v914 = vld [vmem:[%s4 + $0x30] sm:$0xf]
        %v915 = vld [vmem:[%s4 + $0x34] sm:$0xf]
        %v916 = vld [vmem:[%s4 + $0x38] sm:$0xf]
        %v917 = vld [vmem:[%s4 + $0x3c] sm:$0xf]
        %v918 = vld [vmem:[%s4 + $0x40] sm:$0xf]
        %v919 = vld [vmem:[%s4 + $0x44] sm:$0xf]
        %v920 = vld [vmem:[%s4 + $0x48] sm:$0xf]
        %v921 = vld [vmem:[%s4 + $0x4c] sm:$0xf]
        %v922 = vld [vmem:[%s4 + $0x50] sm:$0xf]
        %v923 = vld [vmem:[%s4 + $0x54] sm:$0xf]
        %v924 = vld [vmem:[%s4 + $0x58] sm:$0xf]
        %v925 = vld [vmem:[%s4 + $0x5c] sm:$0xf]
        %v926 = vld [vmem:[%s4 + $0x60] sm:$0xf]
        %v927 = vld [vmem:[%s4 + $0x64] sm:$0xf]
        %v928 = vld [vmem:[%s4 + $0x68] sm:$0xf]
        %v929 = vld [vmem:[%s4 + $0x6c] sm:$0xf]
        %v930 = vld [vmem:[%s4 + $0x70] sm:$0xf]
        %v931 = vld [vmem:[%s4 + $0x74] sm:$0xf]
        %v932 = vld [vmem:[%s4 + $0x78] sm:$0xf]
        %v933 = vld [vmem:[%s4 + $0x7c] sm:$0xf]
        %v934 = vld [vmem:[%s4 + $0x80] sm:$0xf]
        %v935 = vld [vmem:[%s4 + $0x84] sm:$0xf]
        %v936 = vld [vmem:[%s4 + $0x88] sm:$0xf]
        %v937 = vld [vmem:[%s4 + $0x8c] sm:$0xf]
        %v938 = vld [vmem:[%s4 + $0x90] sm:$0xf]
        %v939 = vld [vmem:[%s4 + $0x94] sm:$0xf]
        %v940 = vld [vmem:[%s4 + $0x98] sm:$0xf]
        %v941 = vld [vmem:[%s4 + $0x9c] sm:$0xf]
        %v942 = vld [vmem:[%s4 + $0xa0] sm:$0xf]
        %v943 = vld [vmem:[%s4 + $0xa4] sm:$0xf]
        %v944 = vld [vmem:[%s4 + $0xa8] sm:$0xf]
        %v945 = vld [vmem:[%s4 + $0xac] sm:$0xf]
        %v946 = vld [vmem:[%s4 + $0xb0] sm:$0xf]
        %v947 = vld [vmem:[%s4 + $0xb4] sm:$0xf]
        %v948 = vld [vmem:[%s4 + $0xb8] sm:$0xf]
        %v949 = vld [vmem:[%s4 + $0xbc] sm:$0xf]
        %v950 = vld [vmem:[%s4 + $0xc0] sm:$0xf]
        %v951 = vld [vmem:[%s4 + $0xc4] sm:$0xf]
        %v952 = vld [vmem:[%s4 + $0xc8] sm:$0xf]
        %v953 = vld [vmem:[%s4 + $0xcc] sm:$0xf]
        %v954 = vld [vmem:[%s4 + $0xd0] sm:$0xf]
        %v955 = vld [vmem:[%s4 + $0xd4] sm:$0xf]
        %v956 = vld [vmem:[%s4 + $0xd8] sm:$0xf]
        %v957 = vld [vmem:[%s4 + $0xdc] sm:$0xf]
        %v958 = vld [vmem:[%s4 + $0xe0] sm:$0xf]
        %v959 = vld [vmem:[%s4 + $0xe4] sm:$0xf]
        %v960 = vld [vmem:[%s4 + $0xe8] sm:$0xf]
        %v961 = vld [vmem:[%s4 + $0xec] sm:$0xf]
        %v962 = vld [vmem:[%s4 + $0xf0] sm:$0xf]
        %v963 = vld [vmem:[%s4 + $0xf4] sm:$0xf]
        %v964 = vld [vmem:[%s4 + $0xf8] sm:$0xf]
        %v965 = vld [vmem:[%s4 + $0xfc] sm:$0xf]
        %v970 = vunpack.c.l.b16 %v902
        %v971 = vunpack.c.l.b16 %v903
        %v972 = vunpack.c.l.b16 %v904
        %v973 = vunpack.c.l.b16 %v905
        %v974 = vpack.c.b16 %v971, %v970
        %v975 = vpack.c.b16 %v973, %v972
        %vm976 = vcmask 130048
        %v978 = vsel %vm976, %v974, 0
        %v981 = vsel %vm976, %v975, 0
        %983 = vmatprep.subr.bf16.mxu0 0
        %984 = vmatpush1.bf16.msra.mxu0 0
        %985 = vmatprep.subr.bf16.mxu0 0
        %986 = vmatpush1.bf16.msra.mxu0 0
        %987 = vmatprep.subr.bf16.mxu0 0
        %988 = vmatpush1.bf16.msra.mxu0 0
        %989 = vmatprep.subr.bf16.mxu0 0
        %990 = vmatpush1.bf16.msra.mxu0 0
        %991 = vmatprep.subr.bf16.mxu0 0
        %992 = vmatpush1.bf16.msra.mxu0 0
        %993 = vmatprep.subr.bf16.mxu0 0
        %994 = vmatpush1.bf16.msra.mxu0 0
        %995 = vmatprep.subr.bf16.mxu0 0
        %996 = vmatpush1.bf16.msra.mxu0 0
        %997 = vmatprep.subr.bf16.mxu0 0
        %998 = vmatpush1.bf16.msra.mxu0 %v886
        %999 = vmatprep.subr.bf16.mxu0 0
        %1000 = vmatpush2.bf16.msra.mxu0 0
        %1001 = vmatprep.subr.bf16.mxu0 0
        %1002 = vmatpush2.bf16.msra.mxu0 0
        %1003 = vmatprep.subr.bf16.mxu0 0
        %1004 = vmatpush2.bf16.msra.mxu0 0
        %1005 = vmatprep.subr.bf16.mxu0 0
        %1006 = vmatpush2.bf16.msra.mxu0 0
        %1007 = vmatprep.subr.bf16.mxu0 0
        %1008 = vmatpush2.bf16.msra.mxu0 0
        %1009 = vmatprep.subr.bf16.mxu0 0
        %1010 = vmatpush2.bf16.msra.mxu0 0
        %1011 = vmatprep.subr.bf16.mxu0 0
        %1012 = vmatpush2.bf16.msra.mxu0 0
        %1013 = vmatprep.subr.bf16.mxu0 0
        %1014 = vmatpush2.bf16.msra.mxu0 0
        %1015 = vmatprep.mubr.bf16.mxu0 0
        %1016 = vmatmul.mubr.bf16.gmra.mxu0 %v978
        %v1017 = vpop.f32.mrf.mxu0
        %v1018 = vadd.f32 0.0, %v1017
        %v1019 = vpop.f32.mrf.mxu0
        %v1020 = vpop.f32.mrf.mxu0
        %v1021 = vadd.f32 0.0, %v1020
        %v1022 = vpop.f32.mrf.mxu0
        %1023 = vmatprep.mubr.bf16.mxu0 0
        %1024 = vmatmul.mubr.bf16.gmra.mxu0 %v981
        %v1025 = vpop.f32.mrf.mxu0
        %v1026 = vadd.f32 0.0, %v1025
        %v1027 = vpop.f32.mrf.mxu0
        %v1028 = vpop.f32.mrf.mxu0
        %v1029 = vadd.f32 0.0, %v1028
        %v1030 = vpop.f32.mrf.mxu0
        %1031 = vdwg.mxu0
        %v1036 = vunpack.c.l.b16 %v906
        %v1037 = vunpack.c.l.b16 %v907
        %v1038 = vunpack.c.l.b16 %v908
        %v1039 = vunpack.c.l.b16 %v909
        %v1040 = vpack.c.b16 %v1037, %v1036
        %v1041 = vpack.c.b16 %v1039, %v1038
        %v1043 = vsel %vm976, %v1040, 0
        %v1046 = vsel %vm976, %v1041, 0
        %1048 = vmatprep.subr.bf16.mxu0 0
        %1049 = vmatpush1.bf16.msra.mxu0 0
        %1050 = vmatprep.subr.bf16.mxu0 0
        %1051 = vmatpush1.bf16.msra.mxu0 0
        %1052 = vmatprep.subr.bf16.mxu0 0
        %1053 = vmatpush1.bf16.msra.mxu0 0
        %1054 = vmatprep.subr.bf16.mxu0 0
        %1055 = vmatpush1.bf16.msra.mxu0 0
        %1056 = vmatprep.subr.bf16.mxu0 0
        %1057 = vmatpush1.bf16.msra.mxu0 0
        %1058 = vmatprep.subr.bf16.mxu0 0
        %1059 = vmatpush1.bf16.msra.mxu0 0
        %1060 = vmatprep.subr.bf16.mxu0 0
        %1061 = vmatpush1.bf16.msra.mxu0 0
        %1062 = vmatprep.subr.bf16.mxu0 0
        %1063 = vmatpush1.bf16.msra.mxu0 %v887
        %1064 = vmatprep.subr.bf16.mxu0 0
        %1065 = vmatpush2.bf16.msra.mxu0 0
        %1066 = vmatprep.subr.bf16.mxu0 0
        %1067 = vmatpush2.bf16.msra.mxu0 0
        %1068 = vmatprep.subr.bf16.mxu0 0
        %1069 = vmatpush2.bf16.msra.mxu0 0
        %1070 = vmatprep.subr.bf16.mxu0 0
        %1071 = vmatpush2.bf16.msra.mxu0 0
        %1072 = vmatprep.subr.bf16.mxu0 0
        %1073 = vmatpush2.bf16.msra.mxu0 0
        %1074 = vmatprep.subr.bf16.mxu0 0
        %1075 = vmatpush2.bf16.msra.mxu0 0
        %1076 = vmatprep.subr.bf16.mxu0 0
        %1077 = vmatpush2.bf16.msra.mxu0 0
        %1078 = vmatprep.subr.bf16.mxu0 0
        %1079 = vmatpush2.bf16.msra.mxu0 0
        %1080 = vmatprep.mubr.bf16.mxu0 0
        %1081 = vmatmul.mubr.bf16.gmra.mxu0 %v1043
        %v1082 = vpop.f32.mrf.mxu0
        %v1083 = vadd.f32 0.0, %v1082
        %v1084 = vpop.f32.mrf.mxu0
        %v1085 = vpop.f32.mrf.mxu0
        %v1086 = vadd.f32 0.0, %v1085
        %v1087 = vpop.f32.mrf.mxu0
        %1088 = vmatprep.mubr.bf16.mxu0 0
        %1089 = vmatmul.mubr.bf16.gmra.mxu0 %v1046
        %v1090 = vpop.f32.mrf.mxu0
        %v1091 = vadd.f32 0.0, %v1090
        %v1092 = vpop.f32.mrf.mxu0
        %v1093 = vpop.f32.mrf.mxu0
        %v1094 = vadd.f32 0.0, %v1093
        %v1095 = vpop.f32.mrf.mxu0
        %1096 = vdwg.mxu0
        %v1101 = vunpack.c.l.b16 %v910
        %v1102 = vunpack.c.l.b16 %v911
        %v1103 = vunpack.c.l.b16 %v912
        %v1104 = vunpack.c.l.b16 %v913
        %v1105 = vpack.c.b16 %v1102, %v1101
        %v1106 = vpack.c.b16 %v1104, %v1103
        %v1108 = vsel %vm976, %v1105, 0
        %v1111 = vsel %vm976, %v1106, 0
        %1113 = vmatprep.subr.bf16.mxu0 0
        %1114 = vmatpush1.bf16.msra.mxu0 0
        %1115 = vmatprep.subr.bf16.mxu0 0
        %1116 = vmatpush1.bf16.msra.mxu0 0
        %1117 = vmatprep.subr.bf16.mxu0 0
        %1118 = vmatpush1.bf16.msra.mxu0 0
        %1119 = vmatprep.subr.bf16.mxu0 0
        %1120 = vmatpush1.bf16.msra.mxu0 0
        %1121 = vmatprep.subr.bf16.mxu0 0
        %1122 = vmatpush1.bf16.msra.mxu0 0
        %1123 = vmatprep.subr.bf16.mxu0 0
        %1124 = vmatpush1.bf16.msra.mxu0 0
        %1125 = vmatprep.subr.bf16.mxu0 0
        %1126 = vmatpush1.bf16.msra.mxu0 0
        %1127 = vmatprep.subr.bf16.mxu0 0
        %1128 = vmatpush1.bf16.msra.mxu0 %v888
        %1129 = vmatprep.subr.bf16.mxu0 0
        %1130 = vmatpush2.bf16.msra.mxu0 0
        %1131 = vmatprep.subr.bf16.mxu0 0
        %1132 = vmatpush2.bf16.msra.mxu0 0
        %1133 = vmatprep.subr.bf16.mxu0 0
        %1134 = vmatpush2.bf16.msra.mxu0 0
        %1135 = vmatprep.subr.bf16.mxu0 0
        %1136 = vmatpush2.bf16.msra.mxu0 0
        %1137 = vmatprep.subr.bf16.mxu0 0
        %1138 = vmatpush2.bf16.msra.mxu0 0
        %1139 = vmatprep.subr.bf16.mxu0 0
        %1140 = vmatpush2.bf16.msra.mxu0 0
        %1141 = vmatprep.subr.bf16.mxu0 0
        %1142 = vmatpush2.bf16.msra.mxu0 0
        %1143 = vmatprep.subr.bf16.mxu0 0
        %1144 = vmatpush2.bf16.msra.mxu0 0
        %1145 = vmatprep.mubr.bf16.mxu0 0
        %1146 = vmatmul.mubr.bf16.gmra.mxu0 %v1108
        %v1147 = vpop.f32.mrf.mxu0
        %v1148 = vadd.f32 0.0, %v1147
        %v1149 = vpop.f32.mrf.mxu0
        %v1150 = vpop.f32.mrf.mxu0
        %v1151 = vadd.f32 0.0, %v1150
        %v1152 = vpop.f32.mrf.mxu0
        %1153 = vmatprep.mubr.bf16.mxu0 0
        %1154 = vmatmul.mubr.bf16.gmra.mxu0 %v1111
        %v1155 = vpop.f32.mrf.mxu0
        %v1156 = vadd.f32 0.0, %v1155
        %v1157 = vpop.f32.mrf.mxu0
        %v1158 = vpop.f32.mrf.mxu0
        %v1159 = vadd.f32 0.0, %v1158
        %v1160 = vpop.f32.mrf.mxu0
        %1161 = vdwg.mxu0
        %v1166 = vunpack.c.l.b16 %v914
        %v1167 = vunpack.c.l.b16 %v915
        %v1168 = vunpack.c.l.b16 %v916
        %v1169 = vunpack.c.l.b16 %v917
        %v1170 = vpack.c.b16 %v1167, %v1166
        %v1171 = vpack.c.b16 %v1169, %v1168
        %v1173 = vsel %vm976, %v1170, 0
        %v1176 = vsel %vm976, %v1171, 0
        %1178 = vmatprep.subr.bf16.mxu0 0
        %1179 = vmatpush1.bf16.msra.mxu0 0
        %1180 = vmatprep.subr.bf16.mxu0 0
        %1181 = vmatpush1.bf16.msra.mxu0 0
        %1182 = vmatprep.subr.bf16.mxu0 0
        %1183 = vmatpush1.bf16.msra.mxu0 0
        %1184 = vmatprep.subr.bf16.mxu0 0
        %1185 = vmatpush1.bf16.msra.mxu0 0
        %1186 = vmatprep.subr.bf16.mxu0 0
        %1187 = vmatpush1.bf16.msra.mxu0 0
        %1188 = vmatprep.subr.bf16.mxu0 0
        %1189 = vmatpush1.bf16.msra.mxu0 0
        %1190 = vmatprep.subr.bf16.mxu0 0
        %1191 = vmatpush1.bf16.msra.mxu0 0
        %1192 = vmatprep.subr.bf16.mxu0 0
        %1193 = vmatpush1.bf16.msra.mxu0 %v889
        %1194 = vmatprep.subr.bf16.mxu0 0
        %1195 = vmatpush2.bf16.msra.mxu0 0
        %1196 = vmatprep.subr.bf16.mxu0 0
        %1197 = vmatpush2.bf16.msra.mxu0 0
        %1198 = vmatprep.subr.bf16.mxu0 0
        %1199 = vmatpush2.bf16.msra.mxu0 0
        %1200 = vmatprep.subr.bf16.mxu0 0
        %1201 = vmatpush2.bf16.msra.mxu0 0
        %1202 = vmatprep.subr.bf16.mxu0 0
        %1203 = vmatpush2.bf16.msra.mxu0 0
        %1204 = vmatprep.subr.bf16.mxu0 0
        %1205 = vmatpush2.bf16.msra.mxu0 0
        %1206 = vmatprep.subr.bf16.mxu0 0
        %1207 = vmatpush2.bf16.msra.mxu0 0
        %1208 = vmatprep.subr.bf16.mxu0 0
        %1209 = vmatpush2.bf16.msra.mxu0 0
        %1210 = vmatprep.mubr.bf16.mxu0 0
        %1211 = vmatmul.mubr.bf16.gmra.mxu0 %v1173
        %v1212 = vpop.f32.mrf.mxu0
        %v1213 = vadd.f32 0.0, %v1212
        %v1214 = vpop.f32.mrf.mxu0
        %v1215 = vpop.f32.mrf.mxu0
        %v1216 = vadd.f32 0.0, %v1215
        %v1217 = vpop.f32.mrf.mxu0
        %1218 = vmatprep.mubr.bf16.mxu0 0
        %1219 = vmatmul.mubr.bf16.gmra.mxu0 %v1176
        %v1220 = vpop.f32.mrf.mxu0
        %v1221 = vadd.f32 0.0, %v1220
        %v1222 = vpop.f32.mrf.mxu0
        %v1223 = vpop.f32.mrf.mxu0
        %v1224 = vadd.f32 0.0, %v1223
        %v1225 = vpop.f32.mrf.mxu0
        %1226 = vdwg.mxu0
        %v1231 = vunpack.c.l.b16 %v918
        %v1232 = vunpack.c.l.b16 %v919
        %v1233 = vunpack.c.l.b16 %v920
        %v1234 = vunpack.c.l.b16 %v921
        %v1235 = vpack.c.b16 %v1232, %v1231
        %v1236 = vpack.c.b16 %v1234, %v1233
        %v1238 = vsel %vm976, %v1235, 0
        %v1241 = vsel %vm976, %v1236, 0
        %1243 = vmatprep.subr.bf16.mxu0 0
        %1244 = vmatpush1.bf16.msra.mxu0 0
        %1245 = vmatprep.subr.bf16.mxu0 0
        %1246 = vmatpush1.bf16.msra.mxu0 0
        %1247 = vmatprep.subr.bf16.mxu0 0
        %1248 = vmatpush1.bf16.msra.mxu0 0
        %1249 = vmatprep.subr.bf16.mxu0 0
        %1250 = vmatpush1.bf16.msra.mxu0 0
        %1251 = vmatprep.subr.bf16.mxu0 0
        %1252 = vmatpush1.bf16.msra.mxu0 0
        %1253 = vmatprep.subr.bf16.mxu0 0
        %1254 = vmatpush1.bf16.msra.mxu0 0
        %1255 = vmatprep.subr.bf16.mxu0 0
        %1256 = vmatpush1.bf16.msra.mxu0 0
        %1257 = vmatprep.subr.bf16.mxu0 0
        %1258 = vmatpush1.bf16.msra.mxu0 %v890
        %1259 = vmatprep.subr.bf16.mxu0 0
        %1260 = vmatpush2.bf16.msra.mxu0 0
        %1261 = vmatprep.subr.bf16.mxu0 0
        %1262 = vmatpush2.bf16.msra.mxu0 0
        %1263 = vmatprep.subr.bf16.mxu0 0
        %1264 = vmatpush2.bf16.msra.mxu0 0
        %1265 = vmatprep.subr.bf16.mxu0 0
        %1266 = vmatpush2.bf16.msra.mxu0 0
        %1267 = vmatprep.subr.bf16.mxu0 0
        %1268 = vmatpush2.bf16.msra.mxu0 0
        %1269 = vmatprep.subr.bf16.mxu0 0
        %1270 = vmatpush2.bf16.msra.mxu0 0
        %1271 = vmatprep.subr.bf16.mxu0 0
        %1272 = vmatpush2.bf16.msra.mxu0 0
        %1273 = vmatprep.subr.bf16.mxu0 0
        %1274 = vmatpush2.bf16.msra.mxu0 0
        %1275 = vmatprep.mubr.bf16.mxu0 0
        %1276 = vmatmul.mubr.bf16.gmra.mxu0 %v1238
        %v1277 = vpop.f32.mrf.mxu0
        %v1278 = vadd.f32 0.0, %v1277
        %v1279 = vpop.f32.mrf.mxu0
        %v1280 = vpop.f32.mrf.mxu0
        %v1281 = vadd.f32 0.0, %v1280
        %v1282 = vpop.f32.mrf.mxu0
        %1283 = vmatprep.mubr.bf16.mxu0 0
        %1284 = vmatmul.mubr.bf16.gmra.mxu0 %v1241
        %v1285 = vpop.f32.mrf.mxu0
        %v1286 = vadd.f32 0.0, %v1285
        %v1287 = vpop.f32.mrf.mxu0
        %v1288 = vpop.f32.mrf.mxu0
        %v1289 = vadd.f32 0.0, %v1288
        %v1290 = vpop.f32.mrf.mxu0
        %1291 = vdwg.mxu0
        %v1296 = vunpack.c.l.b16 %v922
        %v1297 = vunpack.c.l.b16 %v923
        %v1298 = vunpack.c.l.b16 %v924
        %v1299 = vunpack.c.l.b16 %v925
        %v1300 = vpack.c.b16 %v1297, %v1296
        %v1301 = vpack.c.b16 %v1299, %v1298
        %v1303 = vsel %vm976, %v1300, 0
        %v1306 = vsel %vm976, %v1301, 0
        %1308 = vmatprep.subr.bf16.mxu0 0
        %1309 = vmatpush1.bf16.msra.mxu0 0
        %1310 = vmatprep.subr.bf16.mxu0 0
        %1311 = vmatpush1.bf16.msra.mxu0 0
        %1312 = vmatprep.subr.bf16.mxu0 0
        %1313 = vmatpush1.bf16.msra.mxu0 0
        %1314 = vmatprep.subr.bf16.mxu0 0
        %1315 = vmatpush1.bf16.msra.mxu0 0
        %1316 = vmatprep.subr.bf16.mxu0 0
        %1317 = vmatpush1.bf16.msra.mxu0 0
        %1318 = vmatprep.subr.bf16.mxu0 0
        %1319 = vmatpush1.bf16.msra.mxu0 0
        %1320 = vmatprep.subr.bf16.mxu0 0
        %1321 = vmatpush1.bf16.msra.mxu0 0
        %1322 = vmatprep.subr.bf16.mxu0 0
        %1323 = vmatpush1.bf16.msra.mxu0 %v891
        %1324 = vmatprep.subr.bf16.mxu0 0
        %1325 = vmatpush2.bf16.msra.mxu0 0
        %1326 = vmatprep.subr.bf16.mxu0 0
        %1327 = vmatpush2.bf16.msra.mxu0 0
        %1328 = vmatprep.subr.bf16.mxu0 0
        %1329 = vmatpush2.bf16.msra.mxu0 0
        %1330 = vmatprep.subr.bf16.mxu0 0
        %1331 = vmatpush2.bf16.msra.mxu0 0
        %1332 = vmatprep.subr.bf16.mxu0 0
        %1333 = vmatpush2.bf16.msra.mxu0 0
        %1334 = vmatprep.subr.bf16.mxu0 0
        %1335 = vmatpush2.bf16.msra.mxu0 0
        %1336 = vmatprep.subr.bf16.mxu0 0
        %1337 = vmatpush2.bf16.msra.mxu0 0
        %1338 = vmatprep.subr.bf16.mxu0 0
        %1339 = vmatpush2.bf16.msra.mxu0 0
        %1340 = vmatprep.mubr.bf16.mxu0 0
        %1341 = vmatmul.mubr.bf16.gmra.mxu0 %v1303
        %v1342 = vpop.f32.mrf.mxu0
        %v1343 = vadd.f32 0.0, %v1342
        %v1344 = vpop.f32.mrf.mxu0
        %v1345 = vpop.f32.mrf.mxu0
        %v1346 = vadd.f32 0.0, %v1345
        %v1347 = vpop.f32.mrf.mxu0
        %1348 = vmatprep.mubr.bf16.mxu0 0
        %1349 = vmatmul.mubr.bf16.gmra.mxu0 %v1306
        %v1350 = vpop.f32.mrf.mxu0
        %v1351 = vadd.f32 0.0, %v1350
        %v1352 = vpop.f32.mrf.mxu0
        %v1353 = vpop.f32.mrf.mxu0
        %v1354 = vadd.f32 0.0, %v1353
        %v1355 = vpop.f32.mrf.mxu0
        %1356 = vdwg.mxu0
        %v1361 = vunpack.c.l.b16 %v926
        %v1362 = vunpack.c.l.b16 %v927
        %v1363 = vunpack.c.l.b16 %v928
        %v1364 = vunpack.c.l.b16 %v929
        %v1365 = vpack.c.b16 %v1362, %v1361
        %v1366 = vpack.c.b16 %v1364, %v1363
        %v1368 = vsel %vm976, %v1365, 0
        %v1371 = vsel %vm976, %v1366, 0
        %1373 = vmatprep.subr.bf16.mxu0 0
        %1374 = vmatpush1.bf16.msra.mxu0 0
        %1375 = vmatprep.subr.bf16.mxu0 0
        %1376 = vmatpush1.bf16.msra.mxu0 0
        %1377 = vmatprep.subr.bf16.mxu0 0
        %1378 = vmatpush1.bf16.msra.mxu0 0
        %1379 = vmatprep.subr.bf16.mxu0 0
        %1380 = vmatpush1.bf16.msra.mxu0 0
        %1381 = vmatprep.subr.bf16.mxu0 0
        %1382 = vmatpush1.bf16.msra.mxu0 0
        %1383 = vmatprep.subr.bf16.mxu0 0
        %1384 = vmatpush1.bf16.msra.mxu0 0
        %1385 = vmatprep.subr.bf16.mxu0 0
        %1386 = vmatpush1.bf16.msra.mxu0 0
        %1387 = vmatprep.subr.bf16.mxu0 0
        %1388 = vmatpush1.bf16.msra.mxu0 %v892
        %1389 = vmatprep.subr.bf16.mxu0 0
        %1390 = vmatpush2.bf16.msra.mxu0 0
        %1391 = vmatprep.subr.bf16.mxu0 0
        %1392 = vmatpush2.bf16.msra.mxu0 0
        %1393 = vmatprep.subr.bf16.mxu0 0
        %1394 = vmatpush2.bf16.msra.mxu0 0
        %1395 = vmatprep.subr.bf16.mxu0 0
        %1396 = vmatpush2.bf16.msra.mxu0 0
        %1397 = vmatprep.subr.bf16.mxu0 0
        %1398 = vmatpush2.bf16.msra.mxu0 0
        %1399 = vmatprep.subr.bf16.mxu0 0
        %1400 = vmatpush2.bf16.msra.mxu0 0
        %1401 = vmatprep.subr.bf16.mxu0 0
        %1402 = vmatpush2.bf16.msra.mxu0 0
        %1403 = vmatprep.subr.bf16.mxu0 0
        %1404 = vmatpush2.bf16.msra.mxu0 0
        %1405 = vmatprep.mubr.bf16.mxu0 0
        %1406 = vmatmul.mubr.bf16.gmra.mxu0 %v1368
        %v1407 = vpop.f32.mrf.mxu0
        %v1408 = vadd.f32 0.0, %v1407
        %v1409 = vpop.f32.mrf.mxu0
        %v1410 = vpop.f32.mrf.mxu0
        %v1411 = vadd.f32 0.0, %v1410
        %v1412 = vpop.f32.mrf.mxu0
        %1413 = vmatprep.mubr.bf16.mxu0 0
        %1414 = vmatmul.mubr.bf16.gmra.mxu0 %v1371
        %v1415 = vpop.f32.mrf.mxu0
        %v1416 = vadd.f32 0.0, %v1415
        %v1417 = vpop.f32.mrf.mxu0
        %v1418 = vpop.f32.mrf.mxu0
        %v1419 = vadd.f32 0.0, %v1418
        %v1420 = vpop.f32.mrf.mxu0
        %1421 = vdwg.mxu0
        %v1426 = vunpack.c.l.b16 %v930
        %v1427 = vunpack.c.l.b16 %v931
        %v1428 = vunpack.c.l.b16 %v932
        %v1429 = vunpack.c.l.b16 %v933
        %v1430 = vpack.c.b16 %v1427, %v1426
        %v1431 = vpack.c.b16 %v1429, %v1428
        %v1433 = vsel %vm976, %v1430, 0
        %v1436 = vsel %vm976, %v1431, 0
        %1438 = vmatprep.subr.bf16.mxu0 0
        %1439 = vmatpush1.bf16.msra.mxu0 0
        %1440 = vmatprep.subr.bf16.mxu0 0
        %1441 = vmatpush1.bf16.msra.mxu0 0
        %1442 = vmatprep.subr.bf16.mxu0 0
        %1443 = vmatpush1.bf16.msra.mxu0 0
        %1444 = vmatprep.subr.bf16.mxu0 0
        %1445 = vmatpush1.bf16.msra.mxu0 0
        %1446 = vmatprep.subr.bf16.mxu0 0
        %1447 = vmatpush1.bf16.msra.mxu0 0
        %1448 = vmatprep.subr.bf16.mxu0 0
        %1449 = vmatpush1.bf16.msra.mxu0 0
        %1450 = vmatprep.subr.bf16.mxu0 0
        %1451 = vmatpush1.bf16.msra.mxu0 0
        %1452 = vmatprep.subr.bf16.mxu0 0
        %1453 = vmatpush1.bf16.msra.mxu0 %v893
        %1454 = vmatprep.subr.bf16.mxu0 0
        %1455 = vmatpush2.bf16.msra.mxu0 0
        %1456 = vmatprep.subr.bf16.mxu0 0
        %1457 = vmatpush2.bf16.msra.mxu0 0
        %1458 = vmatprep.subr.bf16.mxu0 0
        %1459 = vmatpush2.bf16.msra.mxu0 0
        %1460 = vmatprep.subr.bf16.mxu0 0
        %1461 = vmatpush2.bf16.msra.mxu0 0
        %1462 = vmatprep.subr.bf16.mxu0 0
        %1463 = vmatpush2.bf16.msra.mxu0 0
        %1464 = vmatprep.subr.bf16.mxu0 0
        %1465 = vmatpush2.bf16.msra.mxu0 0
        %1466 = vmatprep.subr.bf16.mxu0 0
        %1467 = vmatpush2.bf16.msra.mxu0 0
        %1468 = vmatprep.subr.bf16.mxu0 0
        %1469 = vmatpush2.bf16.msra.mxu0 0
        %1470 = vmatprep.mubr.bf16.mxu0 0
        %1471 = vmatmul.mubr.bf16.gmra.mxu0 %v1433
        %v1472 = vpop.f32.mrf.mxu0
        %v1473 = vadd.f32 0.0, %v1472
        %v1474 = vpop.f32.mrf.mxu0
        %v1475 = vpop.f32.mrf.mxu0
        %v1476 = vadd.f32 0.0, %v1475
        %v1477 = vpop.f32.mrf.mxu0
        %1478 = vmatprep.mubr.bf16.mxu0 0
        %1479 = vmatmul.mubr.bf16.gmra.mxu0 %v1436
        %v1480 = vpop.f32.mrf.mxu0
        %v1481 = vadd.f32 0.0, %v1480
        %v1482 = vpop.f32.mrf.mxu0
        %v1483 = vpop.f32.mrf.mxu0
        %v1484 = vadd.f32 0.0, %v1483
        %v1485 = vpop.f32.mrf.mxu0
        %1486 = vdwg.mxu0
        %v1491 = vunpack.c.l.b16 %v934
        %v1492 = vunpack.c.l.b16 %v935
        %v1493 = vunpack.c.l.b16 %v936
        %v1494 = vunpack.c.l.b16 %v937
        %v1495 = vpack.c.b16 %v1492, %v1491
        %v1496 = vpack.c.b16 %v1494, %v1493
        %v1498 = vsel %vm976, %v1495, 0
        %v1501 = vsel %vm976, %v1496, 0
        %1503 = vmatprep.subr.bf16.mxu0 0
        %1504 = vmatpush1.bf16.msra.mxu0 0
        %1505 = vmatprep.subr.bf16.mxu0 0
        %1506 = vmatpush1.bf16.msra.mxu0 0
        %1507 = vmatprep.subr.bf16.mxu0 0
        %1508 = vmatpush1.bf16.msra.mxu0 0
        %1509 = vmatprep.subr.bf16.mxu0 0
        %1510 = vmatpush1.bf16.msra.mxu0 0
        %1511 = vmatprep.subr.bf16.mxu0 0
        %1512 = vmatpush1.bf16.msra.mxu0 0
        %1513 = vmatprep.subr.bf16.mxu0 0
        %1514 = vmatpush1.bf16.msra.mxu0 0
        %1515 = vmatprep.subr.bf16.mxu0 0
        %1516 = vmatpush1.bf16.msra.mxu0 0
        %1517 = vmatprep.subr.bf16.mxu0 0
        %1518 = vmatpush1.bf16.msra.mxu0 %v894
        %1519 = vmatprep.subr.bf16.mxu0 0
        %1520 = vmatpush2.bf16.msra.mxu0 0
        %1521 = vmatprep.subr.bf16.mxu0 0
        %1522 = vmatpush2.bf16.msra.mxu0 0
        %1523 = vmatprep.subr.bf16.mxu0 0
        %1524 = vmatpush2.bf16.msra.mxu0 0
        %1525 = vmatprep.subr.bf16.mxu0 0
        %1526 = vmatpush2.bf16.msra.mxu0 0
        %1527 = vmatprep.subr.bf16.mxu0 0
        %1528 = vmatpush2.bf16.msra.mxu0 0
        %1529 = vmatprep.subr.bf16.mxu0 0
        %1530 = vmatpush2.bf16.msra.mxu0 0
        %1531 = vmatprep.subr.bf16.mxu0 0
        %1532 = vmatpush2.bf16.msra.mxu0 0
        %1533 = vmatprep.subr.bf16.mxu0 0
        %1534 = vmatpush2.bf16.msra.mxu0 0
        %1535 = vmatprep.mubr.bf16.mxu0 0
        %1536 = vmatmul.mubr.bf16.gmra.mxu0 %v1498
        %v1537 = vpop.f32.mrf.mxu0
        %v1538 = vadd.f32 0.0, %v1537
        %v1539 = vpop.f32.mrf.mxu0
        %v1540 = vpop.f32.mrf.mxu0
        %v1541 = vadd.f32 0.0, %v1540
        %v1542 = vpop.f32.mrf.mxu0
        %1543 = vmatprep.mubr.bf16.mxu0 0
        %1544 = vmatmul.mubr.bf16.gmra.mxu0 %v1501
        %v1545 = vpop.f32.mrf.mxu0
        %v1546 = vadd.f32 0.0, %v1545
        %v1547 = vpop.f32.mrf.mxu0
        %v1548 = vpop.f32.mrf.mxu0
        %v1549 = vadd.f32 0.0, %v1548
        %v1550 = vpop.f32.mrf.mxu0
        %1551 = vdwg.mxu0
        %v1556 = vunpack.c.l.b16 %v938
        %v1557 = vunpack.c.l.b16 %v939
        %v1558 = vunpack.c.l.b16 %v940
        %v1559 = vunpack.c.l.b16 %v941
        %v1560 = vpack.c.b16 %v1557, %v1556
        %v1561 = vpack.c.b16 %v1559, %v1558
        %v1563 = vsel %vm976, %v1560, 0
        %v1566 = vsel %vm976, %v1561, 0
        %1568 = vmatprep.subr.bf16.mxu0 0
        %1569 = vmatpush1.bf16.msra.mxu0 0
        %1570 = vmatprep.subr.bf16.mxu0 0
        %1571 = vmatpush1.bf16.msra.mxu0 0
        %1572 = vmatprep.subr.bf16.mxu0 0
        %1573 = vmatpush1.bf16.msra.mxu0 0
        %1574 = vmatprep.subr.bf16.mxu0 0
        %1575 = vmatpush1.bf16.msra.mxu0 0
        %1576 = vmatprep.subr.bf16.mxu0 0
        %1577 = vmatpush1.bf16.msra.mxu0 0
        %1578 = vmatprep.subr.bf16.mxu0 0
        %1579 = vmatpush1.bf16.msra.mxu0 0
        %1580 = vmatprep.subr.bf16.mxu0 0
        %1581 = vmatpush1.bf16.msra.mxu0 0
        %1582 = vmatprep.subr.bf16.mxu0 0
        %1583 = vmatpush1.bf16.msra.mxu0 %v895
        %1584 = vmatprep.subr.bf16.mxu0 0
        %1585 = vmatpush2.bf16.msra.mxu0 0
        %1586 = vmatprep.subr.bf16.mxu0 0
        %1587 = vmatpush2.bf16.msra.mxu0 0
        %1588 = vmatprep.subr.bf16.mxu0 0
        %1589 = vmatpush2.bf16.msra.mxu0 0
        %1590 = vmatprep.subr.bf16.mxu0 0
        %1591 = vmatpush2.bf16.msra.mxu0 0
        %1592 = vmatprep.subr.bf16.mxu0 0
        %1593 = vmatpush2.bf16.msra.mxu0 0
        %1594 = vmatprep.subr.bf16.mxu0 0
        %1595 = vmatpush2.bf16.msra.mxu0 0
        %1596 = vmatprep.subr.bf16.mxu0 0
        %1597 = vmatpush2.bf16.msra.mxu0 0
        %1598 = vmatprep.subr.bf16.mxu0 0
        %1599 = vmatpush2.bf16.msra.mxu0 0
        %1600 = vmatprep.mubr.bf16.mxu0 0
        %1601 = vmatmul.mubr.bf16.gmra.mxu0 %v1563
        %v1602 = vpop.f32.mrf.mxu0
        %v1603 = vadd.f32 0.0, %v1602
        %v1604 = vpop.f32.mrf.mxu0
        %v1605 = vpop.f32.mrf.mxu0
        %v1606 = vadd.f32 0.0, %v1605
        %v1607 = vpop.f32.mrf.mxu0
        %1608 = vmatprep.mubr.bf16.mxu0 0
        %1609 = vmatmul.mubr.bf16.gmra.mxu0 %v1566
        %v1610 = vpop.f32.mrf.mxu0
        %v1611 = vadd.f32 0.0, %v1610
        %v1612 = vpop.f32.mrf.mxu0
        %v1613 = vpop.f32.mrf.mxu0
        %v1614 = vadd.f32 0.0, %v1613
        %v1615 = vpop.f32.mrf.mxu0
        %1616 = vdwg.mxu0
        %v1621 = vunpack.c.l.b16 %v942
        %v1622 = vunpack.c.l.b16 %v943
        %v1623 = vunpack.c.l.b16 %v944
        %v1624 = vunpack.c.l.b16 %v945
        %v1625 = vpack.c.b16 %v1622, %v1621
        %v1626 = vpack.c.b16 %v1624, %v1623
        %v1628 = vsel %vm976, %v1625, 0
        %v1631 = vsel %vm976, %v1626, 0
        %1633 = vmatprep.subr.bf16.mxu0 0
        %1634 = vmatpush1.bf16.msra.mxu0 0
        %1635 = vmatprep.subr.bf16.mxu0 0
        %1636 = vmatpush1.bf16.msra.mxu0 0
        %1637 = vmatprep.subr.bf16.mxu0 0
        %1638 = vmatpush1.bf16.msra.mxu0 0
        %1639 = vmatprep.subr.bf16.mxu0 0
        %1640 = vmatpush1.bf16.msra.mxu0 0
        %1641 = vmatprep.subr.bf16.mxu0 0
        %1642 = vmatpush1.bf16.msra.mxu0 0
        %1643 = vmatprep.subr.bf16.mxu0 0
        %1644 = vmatpush1.bf16.msra.mxu0 0
        %1645 = vmatprep.subr.bf16.mxu0 0
        %1646 = vmatpush1.bf16.msra.mxu0 0
        %1647 = vmatprep.subr.bf16.mxu0 0
        %1648 = vmatpush1.bf16.msra.mxu0 %v896
        %1649 = vmatprep.subr.bf16.mxu0 0
        %1650 = vmatpush2.bf16.msra.mxu0 0
        %1651 = vmatprep.subr.bf16.mxu0 0
        %1652 = vmatpush2.bf16.msra.mxu0 0
        %1653 = vmatprep.subr.bf16.mxu0 0
        %1654 = vmatpush2.bf16.msra.mxu0 0
        %1655 = vmatprep.subr.bf16.mxu0 0
        %1656 = vmatpush2.bf16.msra.mxu0 0
        %1657 = vmatprep.subr.bf16.mxu0 0
        %1658 = vmatpush2.bf16.msra.mxu0 0
        %1659 = vmatprep.subr.bf16.mxu0 0
        %1660 = vmatpush2.bf16.msra.mxu0 0
        %1661 = vmatprep.subr.bf16.mxu0 0
        %1662 = vmatpush2.bf16.msra.mxu0 0
        %1663 = vmatprep.subr.bf16.mxu0 0
        %1664 = vmatpush2.bf16.msra.mxu0 0
        %1665 = vmatprep.mubr.bf16.mxu0 0
        %1666 = vmatmul.mubr.bf16.gmra.mxu0 %v1628
        %v1667 = vpop.f32.mrf.mxu0
        %v1668 = vadd.f32 0.0, %v1667
        %v1669 = vpop.f32.mrf.mxu0
        %v1670 = vpop.f32.mrf.mxu0
        %v1671 = vadd.f32 0.0, %v1670
        %v1672 = vpop.f32.mrf.mxu0
        %1673 = vmatprep.mubr.bf16.mxu0 0
        %1674 = vmatmul.mubr.bf16.gmra.mxu0 %v1631
        %v1675 = vpop.f32.mrf.mxu0
        %v1676 = vadd.f32 0.0, %v1675
        %v1677 = vpop.f32.mrf.mxu0
        %v1678 = vpop.f32.mrf.mxu0
        %v1679 = vadd.f32 0.0, %v1678
        %v1680 = vpop.f32.mrf.mxu0
        %1681 = vdwg.mxu0
        %v1686 = vunpack.c.l.b16 %v946
        %v1687 = vunpack.c.l.b16 %v947
        %v1688 = vunpack.c.l.b16 %v948
        %v1689 = vunpack.c.l.b16 %v949
        %v1690 = vpack.c.b16 %v1687, %v1686
        %v1691 = vpack.c.b16 %v1689, %v1688
        %v1693 = vsel %vm976, %v1690, 0
        %v1696 = vsel %vm976, %v1691, 0
        %1698 = vmatprep.subr.bf16.mxu0 0
        %1699 = vmatpush1.bf16.msra.mxu0 0
        %1700 = vmatprep.subr.bf16.mxu0 0
        %1701 = vmatpush1.bf16.msra.mxu0 0
        %1702 = vmatprep.subr.bf16.mxu0 0
        %1703 = vmatpush1.bf16.msra.mxu0 0
        %1704 = vmatprep.subr.bf16.mxu0 0
        %1705 = vmatpush1.bf16.msra.mxu0 0
        %1706 = vmatprep.subr.bf16.mxu0 0
        %1707 = vmatpush1.bf16.msra.mxu0 0
        %1708 = vmatprep.subr.bf16.mxu0 0
        %1709 = vmatpush1.bf16.msra.mxu0 0
        %1710 = vmatprep.subr.bf16.mxu0 0
        %1711 = vmatpush1.bf16.msra.mxu0 0
        %1712 = vmatprep.subr.bf16.mxu0 0
        %1713 = vmatpush1.bf16.msra.mxu0 %v897
        %1714 = vmatprep.subr.bf16.mxu0 0
        %1715 = vmatpush2.bf16.msra.mxu0 0
        %1716 = vmatprep.subr.bf16.mxu0 0
        %1717 = vmatpush2.bf16.msra.mxu0 0
        %1718 = vmatprep.subr.bf16.mxu0 0
        %1719 = vmatpush2.bf16.msra.mxu0 0
        %1720 = vmatprep.subr.bf16.mxu0 0
        %1721 = vmatpush2.bf16.msra.mxu0 0
        %1722 = vmatprep.subr.bf16.mxu0 0
        %1723 = vmatpush2.bf16.msra.mxu0 0
        %1724 = vmatprep.subr.bf16.mxu0 0
        %1725 = vmatpush2.bf16.msra.mxu0 0
        %1726 = vmatprep.subr.bf16.mxu0 0
        %1727 = vmatpush2.bf16.msra.mxu0 0
        %1728 = vmatprep.subr.bf16.mxu0 0
        %1729 = vmatpush2.bf16.msra.mxu0 0
        %1730 = vmatprep.mubr.bf16.mxu0 0
        %1731 = vmatmul.mubr.bf16.gmra.mxu0 %v1693
        %v1732 = vpop.f32.mrf.mxu0
        %v1733 = vadd.f32 0.0, %v1732
        %v1734 = vpop.f32.mrf.mxu0
        %v1735 = vpop.f32.mrf.mxu0
        %v1736 = vadd.f32 0.0, %v1735
        %v1737 = vpop.f32.mrf.mxu0
        %1738 = vmatprep.mubr.bf16.mxu0 0
        %1739 = vmatmul.mubr.bf16.gmra.mxu0 %v1696
        %v1740 = vpop.f32.mrf.mxu0
        %v1741 = vadd.f32 0.0, %v1740
        %v1742 = vpop.f32.mrf.mxu0
        %v1743 = vpop.f32.mrf.mxu0
        %v1744 = vadd.f32 0.0, %v1743
        %v1745 = vpop.f32.mrf.mxu0
        %1746 = vdwg.mxu0
        %v1751 = vunpack.c.l.b16 %v950
        %v1752 = vunpack.c.l.b16 %v951
        %v1753 = vunpack.c.l.b16 %v952
        %v1754 = vunpack.c.l.b16 %v953
        %v1755 = vpack.c.b16 %v1752, %v1751
        %v1756 = vpack.c.b16 %v1754, %v1753
        %v1758 = vsel %vm976, %v1755, 0
        %v1761 = vsel %vm976, %v1756, 0
        %1763 = vmatprep.subr.bf16.mxu0 0
        %1764 = vmatpush1.bf16.msra.mxu0 0
        %1765 = vmatprep.subr.bf16.mxu0 0
        %1766 = vmatpush1.bf16.msra.mxu0 0
        %1767 = vmatprep.subr.bf16.mxu0 0
        %1768 = vmatpush1.bf16.msra.mxu0 0
        %1769 = vmatprep.subr.bf16.mxu0 0
        %1770 = vmatpush1.bf16.msra.mxu0 0
        %1771 = vmatprep.subr.bf16.mxu0 0
        %1772 = vmatpush1.bf16.msra.mxu0 0
        %1773 = vmatprep.subr.bf16.mxu0 0
        %1774 = vmatpush1.bf16.msra.mxu0 0
        %1775 = vmatprep.subr.bf16.mxu0 0
        %1776 = vmatpush1.bf16.msra.mxu0 0
        %1777 = vmatprep.subr.bf16.mxu0 0
        %1778 = vmatpush1.bf16.msra.mxu0 %v898
        %1779 = vmatprep.subr.bf16.mxu0 0
        %1780 = vmatpush2.bf16.msra.mxu0 0
        %1781 = vmatprep.subr.bf16.mxu0 0
        %1782 = vmatpush2.bf16.msra.mxu0 0
        %1783 = vmatprep.subr.bf16.mxu0 0
        %1784 = vmatpush2.bf16.msra.mxu0 0
        %1785 = vmatprep.subr.bf16.mxu0 0
        %1786 = vmatpush2.bf16.msra.mxu0 0
        %1787 = vmatprep.subr.bf16.mxu0 0
        %1788 = vmatpush2.bf16.msra.mxu0 0
        %1789 = vmatprep.subr.bf16.mxu0 0
        %1790 = vmatpush2.bf16.msra.mxu0 0
        %1791 = vmatprep.subr.bf16.mxu0 0
        %1792 = vmatpush2.bf16.msra.mxu0 0
        %1793 = vmatprep.subr.bf16.mxu0 0
        %1794 = vmatpush2.bf16.msra.mxu0 0
        %1795 = vmatprep.mubr.bf16.mxu0 0
        %1796 = vmatmul.mubr.bf16.gmra.mxu0 %v1758
        %v1797 = vpop.f32.mrf.mxu0
        %v1798 = vadd.f32 0.0, %v1797
        %v1799 = vpop.f32.mrf.mxu0
        %v1800 = vpop.f32.mrf.mxu0
        %v1801 = vadd.f32 0.0, %v1800
        %v1802 = vpop.f32.mrf.mxu0
        %1803 = vmatprep.mubr.bf16.mxu0 0
        %1804 = vmatmul.mubr.bf16.gmra.mxu0 %v1761
        %v1805 = vpop.f32.mrf.mxu0
        %v1806 = vadd.f32 0.0, %v1805
        %v1807 = vpop.f32.mrf.mxu0
        %v1808 = vpop.f32.mrf.mxu0
        %v1809 = vadd.f32 0.0, %v1808
        %v1810 = vpop.f32.mrf.mxu0
        %1811 = vdwg.mxu0
        %v1816 = vunpack.c.l.b16 %v954
        %v1817 = vunpack.c.l.b16 %v955
        %v1818 = vunpack.c.l.b16 %v956
        %v1819 = vunpack.c.l.b16 %v957
        %v1820 = vpack.c.b16 %v1817, %v1816
        %v1821 = vpack.c.b16 %v1819, %v1818
        %v1823 = vsel %vm976, %v1820, 0
        %v1826 = vsel %vm976, %v1821, 0
        %1828 = vmatprep.subr.bf16.mxu0 0
        %1829 = vmatpush1.bf16.msra.mxu0 0
        %1830 = vmatprep.subr.bf16.mxu0 0
        %1831 = vmatpush1.bf16.msra.mxu0 0
        %1832 = vmatprep.subr.bf16.mxu0 0
        %1833 = vmatpush1.bf16.msra.mxu0 0
        %1834 = vmatprep.subr.bf16.mxu0 0
        %1835 = vmatpush1.bf16.msra.mxu0 0
        %1836 = vmatprep.subr.bf16.mxu0 0
        %1837 = vmatpush1.bf16.msra.mxu0 0
        %1838 = vmatprep.subr.bf16.mxu0 0
        %1839 = vmatpush1.bf16.msra.mxu0 0
        %1840 = vmatprep.subr.bf16.mxu0 0
        %1841 = vmatpush1.bf16.msra.mxu0 0
        %1842 = vmatprep.subr.bf16.mxu0 0
        %1843 = vmatpush1.bf16.msra.mxu0 %v899
        %1844 = vmatprep.subr.bf16.mxu0 0
        %1845 = vmatpush2.bf16.msra.mxu0 0
        %1846 = vmatprep.subr.bf16.mxu0 0
        %1847 = vmatpush2.bf16.msra.mxu0 0
        %1848 = vmatprep.subr.bf16.mxu0 0
        %1849 = vmatpush2.bf16.msra.mxu0 0
        %1850 = vmatprep.subr.bf16.mxu0 0
        %1851 = vmatpush2.bf16.msra.mxu0 0
        %1852 = vmatprep.subr.bf16.mxu0 0
        %1853 = vmatpush2.bf16.msra.mxu0 0
        %1854 = vmatprep.subr.bf16.mxu0 0
        %1855 = vmatpush2.bf16.msra.mxu0 0
        %1856 = vmatprep.subr.bf16.mxu0 0
        %1857 = vmatpush2.bf16.msra.mxu0 0
        %1858 = vmatprep.subr.bf16.mxu0 0
        %1859 = vmatpush2.bf16.msra.mxu0 0
        %1860 = vmatprep.mubr.bf16.mxu0 0
        %1861 = vmatmul.mubr.bf16.gmra.mxu0 %v1823
        %v1862 = vpop.f32.mrf.mxu0
        %v1863 = vadd.f32 0.0, %v1862
        %v1864 = vpop.f32.mrf.mxu0
        %v1865 = vpop.f32.mrf.mxu0
        %v1866 = vadd.f32 0.0, %v1865
        %v1867 = vpop.f32.mrf.mxu0
        %1868 = vmatprep.mubr.bf16.mxu0 0
        %1869 = vmatmul.mubr.bf16.gmra.mxu0 %v1826
        %v1870 = vpop.f32.mrf.mxu0
        %v1871 = vadd.f32 0.0, %v1870
        %v1872 = vpop.f32.mrf.mxu0
        %v1873 = vpop.f32.mrf.mxu0
        %v1874 = vadd.f32 0.0, %v1873
        %v1875 = vpop.f32.mrf.mxu0
        %1876 = vdwg.mxu0
        %v1881 = vunpack.c.l.b16 %v958
        %v1882 = vunpack.c.l.b16 %v959
        %v1883 = vunpack.c.l.b16 %v960
        %v1884 = vunpack.c.l.b16 %v961
        %v1885 = vpack.c.b16 %v1882, %v1881
        %v1886 = vpack.c.b16 %v1884, %v1883
        %v1888 = vsel %vm976, %v1885, 0
        %v1891 = vsel %vm976, %v1886, 0
        %1893 = vmatprep.subr.bf16.mxu0 0
        %1894 = vmatpush1.bf16.msra.mxu0 0
        %1895 = vmatprep.subr.bf16.mxu0 0
        %1896 = vmatpush1.bf16.msra.mxu0 0
        %1897 = vmatprep.subr.bf16.mxu0 0
        %1898 = vmatpush1.bf16.msra.mxu0 0
        %1899 = vmatprep.subr.bf16.mxu0 0
        %1900 = vmatpush1.bf16.msra.mxu0 0
        %1901 = vmatprep.subr.bf16.mxu0 0
        %1902 = vmatpush1.bf16.msra.mxu0 0
        %1903 = vmatprep.subr.bf16.mxu0 0
        %1904 = vmatpush1.bf16.msra.mxu0 0
        %1905 = vmatprep.subr.bf16.mxu0 0
        %1906 = vmatpush1.bf16.msra.mxu0 0
        %1907 = vmatprep.subr.bf16.mxu0 0
        %1908 = vmatpush1.bf16.msra.mxu0 %v900
        %1909 = vmatprep.subr.bf16.mxu0 0
        %1910 = vmatpush2.bf16.msra.mxu0 0
        %1911 = vmatprep.subr.bf16.mxu0 0
        %1912 = vmatpush2.bf16.msra.mxu0 0
        %1913 = vmatprep.subr.bf16.mxu0 0
        %1914 = vmatpush2.bf16.msra.mxu0 0
        %1915 = vmatprep.subr.bf16.mxu0 0
        %1916 = vmatpush2.bf16.msra.mxu0 0
        %1917 = vmatprep.subr.bf16.mxu0 0
        %1918 = vmatpush2.bf16.msra.mxu0 0
        %1919 = vmatprep.subr.bf16.mxu0 0
        %1920 = vmatpush2.bf16.msra.mxu0 0
        %1921 = vmatprep.subr.bf16.mxu0 0
        %1922 = vmatpush2.bf16.msra.mxu0 0
        %1923 = vmatprep.subr.bf16.mxu0 0
        %1924 = vmatpush2.bf16.msra.mxu0 0
        %1925 = vmatprep.mubr.bf16.mxu0 0
        %1926 = vmatmul.mubr.bf16.gmra.mxu0 %v1888
        %v1927 = vpop.f32.mrf.mxu0
        %v1928 = vadd.f32 0.0, %v1927
        %v1929 = vpop.f32.mrf.mxu0
        %v1930 = vpop.f32.mrf.mxu0
        %v1931 = vadd.f32 0.0, %v1930
        %v1932 = vpop.f32.mrf.mxu0
        %1933 = vmatprep.mubr.bf16.mxu0 0
        %1934 = vmatmul.mubr.bf16.gmra.mxu0 %v1891
        %v1935 = vpop.f32.mrf.mxu0
        %v1936 = vadd.f32 0.0, %v1935
        %v1937 = vpop.f32.mrf.mxu0
        %v1938 = vpop.f32.mrf.mxu0
        %v1939 = vadd.f32 0.0, %v1938
        %v1940 = vpop.f32.mrf.mxu0
        %1941 = vdwg.mxu0
        %v1946 = vunpack.c.l.b16 %v962
        %v1947 = vunpack.c.l.b16 %v963
        %v1948 = vunpack.c.l.b16 %v964
        %v1949 = vunpack.c.l.b16 %v965
        %v1950 = vpack.c.b16 %v1947, %v1946
        %v1951 = vpack.c.b16 %v1949, %v1948
        %v1953 = vsel %vm976, %v1950, 0
        %v1956 = vsel %vm976, %v1951, 0
        %1958 = vmatprep.subr.bf16.mxu0 0
        %1959 = vmatpush1.bf16.msra.mxu0 0
        %1960 = vmatprep.subr.bf16.mxu0 0
        %1961 = vmatpush1.bf16.msra.mxu0 0
        %1962 = vmatprep.subr.bf16.mxu0 0
        %1963 = vmatpush1.bf16.msra.mxu0 0
        %1964 = vmatprep.subr.bf16.mxu0 0
        %1965 = vmatpush1.bf16.msra.mxu0 0
        %1966 = vmatprep.subr.bf16.mxu0 0
        %1967 = vmatpush1.bf16.msra.mxu0 0
        %1968 = vmatprep.subr.bf16.mxu0 0
        %1969 = vmatpush1.bf16.msra.mxu0 0
        %1970 = vmatprep.subr.bf16.mxu0 0
        %1971 = vmatpush1.bf16.msra.mxu0 0
        %1972 = vmatprep.subr.bf16.mxu0 0
        %1973 = vmatpush1.bf16.msra.mxu0 %v901
        %1974 = vmatprep.subr.bf16.mxu0 0
        %1975 = vmatpush2.bf16.msra.mxu0 0
        %1976 = vmatprep.subr.bf16.mxu0 0
        %1977 = vmatpush2.bf16.msra.mxu0 0
        %1978 = vmatprep.subr.bf16.mxu0 0
        %1979 = vmatpush2.bf16.msra.mxu0 0
        %1980 = vmatprep.subr.bf16.mxu0 0
        %1981 = vmatpush2.bf16.msra.mxu0 0
        %1982 = vmatprep.subr.bf16.mxu0 0
        %1983 = vmatpush2.bf16.msra.mxu0 0
        %1984 = vmatprep.subr.bf16.mxu0 0
        %1985 = vmatpush2.bf16.msra.mxu0 0
        %1986 = vmatprep.subr.bf16.mxu0 0
        %1987 = vmatpush2.bf16.msra.mxu0 0
        %1988 = vmatprep.subr.bf16.mxu0 0
        %1989 = vmatpush2.bf16.msra.mxu0 0
        %1990 = vmatprep.mubr.bf16.mxu0 0
        %1991 = vmatmul.mubr.bf16.gmra.mxu0 %v1953
        %v1992 = vpop.f32.mrf.mxu0
        %v1993 = vadd.f32 0.0, %v1992
        %v1994 = vpop.f32.mrf.mxu0
        %v1995 = vpop.f32.mrf.mxu0
        %v1996 = vadd.f32 0.0, %v1995
        %v1997 = vpop.f32.mrf.mxu0
        %1998 = vmatprep.mubr.bf16.mxu0 0
        %1999 = vmatmul.mubr.bf16.gmra.mxu0 %v1956
        %v2000 = vpop.f32.mrf.mxu0
        %v2001 = vadd.f32 0.0, %v2000
        %v2002 = vpop.f32.mrf.mxu0
        %v2003 = vpop.f32.mrf.mxu0
        %v2004 = vadd.f32 0.0, %v2003
        %v2005 = vpop.f32.mrf.mxu0
        %2006 = vdwg.mxu0
        %v2007 = vpack.c.bf16 %v1021, %v1018
        %v2008 = vpack.c.bf16 %v1029, %v1026
        %v2009 = vpack.c.bf16 %v1086, %v1083
        %v2010 = vpack.c.bf16 %v1094, %v1091
        %v2011 = vpack.c.bf16 %v1151, %v1148
        %v2012 = vpack.c.bf16 %v1159, %v1156
        %v2013 = vpack.c.bf16 %v1216, %v1213
        %v2014 = vpack.c.bf16 %v1224, %v1221
        %v2015 = vpack.c.bf16 %v1281, %v1278
        %v2016 = vpack.c.bf16 %v1289, %v1286
        %v2017 = vpack.c.bf16 %v1346, %v1343
        %v2018 = vpack.c.bf16 %v1354, %v1351
        %v2019 = vpack.c.bf16 %v1411, %v1408
        %v2020 = vpack.c.bf16 %v1419, %v1416
        %v2021 = vpack.c.bf16 %v1476, %v1473
        %v2022 = vpack.c.bf16 %v1484, %v1481
        %v2023 = vpack.c.bf16 %v1541, %v1538
        %v2024 = vpack.c.bf16 %v1549, %v1546
        %v2025 = vpack.c.bf16 %v1606, %v1603
        %v2026 = vpack.c.bf16 %v1614, %v1611
        %v2027 = vpack.c.bf16 %v1671, %v1668
        %v2028 = vpack.c.bf16 %v1679, %v1676
        %v2029 = vpack.c.bf16 %v1736, %v1733
        %v2030 = vpack.c.bf16 %v1744, %v1741
        %v2031 = vpack.c.bf16 %v1801, %v1798
        %v2032 = vpack.c.bf16 %v1809, %v1806
        %v2033 = vpack.c.bf16 %v1866, %v1863
        %v2034 = vpack.c.bf16 %v1874, %v1871
        %v2035 = vpack.c.bf16 %v1931, %v1928
        %v2036 = vpack.c.bf16 %v1939, %v1936
        %v2037 = vpack.c.bf16 %v1996, %v1993
        %v2038 = vpack.c.bf16 %v2004, %v2001
        %v2039 = vcombine.low %v2007, %v2015
        %v2040 = vcombine.high %v2007, %v2015
        %v2042 = vunpack.c.l.s4 1983009808
        %v2043 = vunpack.c.0.s8 %v2042
        %v2044 = vlaneseq
        %v2045 = vshrl.u32 %v2044, 7
        %v2046 = vsub.s32 %v2043, %v2045
        %v2047 = vrot.slane %v2039, %v2046
        %v2049 = vunpack.c.l.s4 1983009808
        %v2050 = vunpack.c.0.s8 %v2049
        %v2051 = vlaneseq
        %v2052 = vshrl.u32 %v2051, 7
        %v2053 = vsub.s32 %v2050, %v2052
        %v2054 = vrot.slane %v2040, %v2053
        %v2055 = vcombine.low %v2011, %v2019
        %v2056 = vcombine.high %v2011, %v2019
        %v2058 = vunpack.c.l.s4 1983009808
        %v2059 = vunpack.c.0.s8 %v2058
        %v2060 = vlaneseq
        %v2061 = vshrl.u32 %v2060, 7
        %v2062 = vsub.s32 %v2059, %v2061
        %v2063 = vrot.slane %v2055, %v2062
        %v2065 = vunpack.c.l.s4 1983009808
        %v2066 = vunpack.c.0.s8 %v2065
        %v2067 = vlaneseq
        %v2068 = vshrl.u32 %v2067, 7
        %v2069 = vsub.s32 %v2066, %v2068
        %v2070 = vrot.slane %v2056, %v2069
        %v2071 = vcombine.low %v2023, %v2031
        %v2072 = vcombine.high %v2023, %v2031
        %v2074 = vunpack.c.l.s4 1983009808
        %v2075 = vunpack.c.0.s8 %v2074
        %v2076 = vlaneseq
        %v2077 = vshrl.u32 %v2076, 7
        %v2078 = vsub.s32 %v2075, %v2077
        %v2079 = vrot.slane %v2071, %v2078
        %v2081 = vunpack.c.l.s4 1983009808
        %v2082 = vunpack.c.0.s8 %v2081
        %v2083 = vlaneseq
        %v2084 = vshrl.u32 %v2083, 7
        %v2085 = vsub.s32 %v2082, %v2084
        %v2086 = vrot.slane %v2072, %v2085
        %v2087 = vcombine.low %v2027, %v2035
        %v2088 = vcombine.high %v2027, %v2035
        %v2090 = vunpack.c.l.s4 1983009808
        %v2091 = vunpack.c.0.s8 %v2090
        %v2092 = vlaneseq
        %v2093 = vshrl.u32 %v2092, 7
        %v2094 = vsub.s32 %v2091, %v2093
        %v2095 = vrot.slane %v2087, %v2094
        %v2097 = vunpack.c.l.s4 1983009808
        %v2098 = vunpack.c.0.s8 %v2097
        %v2099 = vlaneseq
        %v2100 = vshrl.u32 %v2099, 7
        %v2101 = vsub.s32 %v2098, %v2100
        %v2102 = vrot.slane %v2088, %v2101
        %v2103 = vcombine.low %v2047, %v2063
        %v2104 = vcombine.high %v2047, %v2063
        %v2106 = vunpack.c.l.s4 1934713408
        %v2107 = vunpack.c.0.s8 %v2106
        %v2108 = vlaneseq
        %v2109 = vshrl.u32 %v2108, 7
        %v2110 = vsub.s32 %v2107, %v2109
        %v2111 = vrot.slane %v2103, %v2110
        %v2113 = vunpack.c.l.s4 1934713408
        %v2114 = vunpack.c.0.s8 %v2113
        %v2115 = vlaneseq
        %v2116 = vshrl.u32 %v2115, 7
        %v2117 = vsub.s32 %v2114, %v2116
        %v2118 = vrot.slane %v2104, %v2117
        %v2119 = vcombine.low %v2054, %v2070
        %v2120 = vcombine.high %v2054, %v2070
        %v2122 = vunpack.c.l.s4 1934713408
        %v2123 = vunpack.c.0.s8 %v2122
        %v2124 = vlaneseq
        %v2125 = vshrl.u32 %v2124, 7
        %v2126 = vsub.s32 %v2123, %v2125
        %v2127 = vrot.slane %v2119, %v2126
        %v2129 = vunpack.c.l.s4 1934713408
        %v2130 = vunpack.c.0.s8 %v2129
        %v2131 = vlaneseq
        %v2132 = vshrl.u32 %v2131, 7
        %v2133 = vsub.s32 %v2130, %v2132
        %v2134 = vrot.slane %v2120, %v2133
        %v2135 = vcombine.low %v2079, %v2095
        %v2136 = vcombine.high %v2079, %v2095
        %v2138 = vunpack.c.l.s4 1934713408
        %v2139 = vunpack.c.0.s8 %v2138
        %v2140 = vlaneseq
        %v2141 = vshrl.u32 %v2140, 7
        %v2142 = vsub.s32 %v2139, %v2141
        %v2143 = vrot.slane %v2135, %v2142
        %v2145 = vunpack.c.l.s4 1934713408
        %v2146 = vunpack.c.0.s8 %v2145
        %v2147 = vlaneseq
        %v2148 = vshrl.u32 %v2147, 7
        %v2149 = vsub.s32 %v2146, %v2148
        %v2150 = vrot.slane %v2136, %v2149
        %v2151 = vcombine.low %v2086, %v2102
        %v2152 = vcombine.high %v2086, %v2102
        %v2154 = vunpack.c.l.s4 1934713408
        %v2155 = vunpack.c.0.s8 %v2154
        %v2156 = vlaneseq
        %v2157 = vshrl.u32 %v2156, 7
        %v2158 = vsub.s32 %v2155, %v2157
        %v2159 = vrot.slane %v2151, %v2158
        %v2161 = vunpack.c.l.s4 1934713408
        %v2162 = vunpack.c.0.s8 %v2161
        %v2163 = vlaneseq
        %v2164 = vshrl.u32 %v2163, 7
        %v2165 = vsub.s32 %v2162, %v2164
        %v2166 = vrot.slane %v2152, %v2165
        %v2167 = vcombine.low %v2111, %v2143
        %v2168 = vcombine.high %v2111, %v2143
        %v2169 = vcombine.low %v2118, %v2150
        %v2170 = vcombine.high %v2118, %v2150
        %v2171 = vcombine.low %v2127, %v2159
        %v2172 = vcombine.high %v2127, %v2159
        %v2173 = vcombine.low %v2134, %v2166
        %v2174 = vcombine.high %v2134, %v2166
        %v2175 = vcombine.low %v2009, %v2017
        %v2176 = vcombine.high %v2009, %v2017
        %v2178 = vunpack.c.l.s4 1983009808
        %v2179 = vunpack.c.0.s8 %v2178
        %v2180 = vlaneseq
        %v2181 = vshrl.u32 %v2180, 7
        %v2182 = vsub.s32 %v2179, %v2181
        %v2183 = vrot.slane %v2175, %v2182
        %v2185 = vunpack.c.l.s4 1983009808
        %v2186 = vunpack.c.0.s8 %v2185
        %v2187 = vlaneseq
        %v2188 = vshrl.u32 %v2187, 7
        %v2189 = vsub.s32 %v2186, %v2188
        %v2190 = vrot.slane %v2176, %v2189
        %v2191 = vcombine.low %v2013, %v2021
        %v2192 = vcombine.high %v2013, %v2021
        %v2194 = vunpack.c.l.s4 1983009808
        %v2195 = vunpack.c.0.s8 %v2194
        %v2196 = vlaneseq
        %v2197 = vshrl.u32 %v2196, 7
        %v2198 = vsub.s32 %v2195, %v2197
        %v2199 = vrot.slane %v2191, %v2198
        %v2201 = vunpack.c.l.s4 1983009808
        %v2202 = vunpack.c.0.s8 %v2201
        %v2203 = vlaneseq
        %v2204 = vshrl.u32 %v2203, 7
        %v2205 = vsub.s32 %v2202, %v2204
        %v2206 = vrot.slane %v2192, %v2205
        %v2207 = vcombine.low %v2025, %v2033
        %v2208 = vcombine.high %v2025, %v2033
        %v2210 = vunpack.c.l.s4 1983009808
        %v2211 = vunpack.c.0.s8 %v2210
        %v2212 = vlaneseq
        %v2213 = vshrl.u32 %v2212, 7
        %v2214 = vsub.s32 %v2211, %v2213
        %v2215 = vrot.slane %v2207, %v2214
        %v2217 = vunpack.c.l.s4 1983009808
        %v2218 = vunpack.c.0.s8 %v2217
        %v2219 = vlaneseq
        %v2220 = vshrl.u32 %v2219, 7
        %v2221 = vsub.s32 %v2218, %v2220
        %v2222 = vrot.slane %v2208, %v2221
        %v2223 = vcombine.low %v2029, %v2037
        %v2224 = vcombine.high %v2029, %v2037
        %v2226 = vunpack.c.l.s4 1983009808
        %v2227 = vunpack.c.0.s8 %v2226
        %v2228 = vlaneseq
        %v2229 = vshrl.u32 %v2228, 7
        %v2230 = vsub.s32 %v2227, %v2229
        %v2231 = vrot.slane %v2223, %v2230
        %v2233 = vunpack.c.l.s4 1983009808
        %v2234 = vunpack.c.0.s8 %v2233
        %v2235 = vlaneseq
        %v2236 = vshrl.u32 %v2235, 7
        %v2237 = vsub.s32 %v2234, %v2236
        %v2238 = vrot.slane %v2224, %v2237
        %v2239 = vcombine.low %v2183, %v2199
        %v2240 = vcombine.high %v2183, %v2199
        %v2242 = vunpack.c.l.s4 1934713408
        %v2243 = vunpack.c.0.s8 %v2242
        %v2244 = vlaneseq
        %v2245 = vshrl.u32 %v2244, 7
        %v2246 = vsub.s32 %v2243, %v2245
        %v2247 = vrot.slane %v2239, %v2246
        %v2249 = vunpack.c.l.s4 1934713408
        %v2250 = vunpack.c.0.s8 %v2249
        %v2251 = vlaneseq
        %v2252 = vshrl.u32 %v2251, 7
        %v2253 = vsub.s32 %v2250, %v2252
        %v2254 = vrot.slane %v2240, %v2253
        %v2255 = vcombine.low %v2190, %v2206
        %v2256 = vcombine.high %v2190, %v2206
        %v2258 = vunpack.c.l.s4 1934713408
        %v2259 = vunpack.c.0.s8 %v2258
        %v2260 = vlaneseq
        %v2261 = vshrl.u32 %v2260, 7
        %v2262 = vsub.s32 %v2259, %v2261
        %v2263 = vrot.slane %v2255, %v2262
        %v2265 = vunpack.c.l.s4 1934713408
        %v2266 = vunpack.c.0.s8 %v2265
        %v2267 = vlaneseq
        %v2268 = vshrl.u32 %v2267, 7
        %v2269 = vsub.s32 %v2266, %v2268
        %v2270 = vrot.slane %v2256, %v2269
        %v2271 = vcombine.low %v2215, %v2231
        %v2272 = vcombine.high %v2215, %v2231
        %v2274 = vunpack.c.l.s4 1934713408
        %v2275 = vunpack.c.0.s8 %v2274
        %v2276 = vlaneseq
        %v2277 = vshrl.u32 %v2276, 7
        %v2278 = vsub.s32 %v2275, %v2277
        %v2279 = vrot.slane %v2271, %v2278
        %v2281 = vunpack.c.l.s4 1934713408
        %v2282 = vunpack.c.0.s8 %v2281
        %v2283 = vlaneseq
        %v2284 = vshrl.u32 %v2283, 7
        %v2285 = vsub.s32 %v2282, %v2284
        %v2286 = vrot.slane %v2272, %v2285
        %v2287 = vcombine.low %v2222, %v2238
        %v2288 = vcombine.high %v2222, %v2238
        %v2290 = vunpack.c.l.s4 1934713408
        %v2291 = vunpack.c.0.s8 %v2290
        %v2292 = vlaneseq
        %v2293 = vshrl.u32 %v2292, 7
        %v2294 = vsub.s32 %v2291, %v2293
        %v2295 = vrot.slane %v2287, %v2294
        %v2297 = vunpack.c.l.s4 1934713408
        %v2298 = vunpack.c.0.s8 %v2297
        %v2299 = vlaneseq
        %v2300 = vshrl.u32 %v2299, 7
        %v2301 = vsub.s32 %v2298, %v2300
        %v2302 = vrot.slane %v2288, %v2301
        %v2303 = vcombine.low %v2247, %v2279
        %v2304 = vcombine.high %v2247, %v2279
        %v2305 = vcombine.low %v2254, %v2286
        %v2306 = vcombine.high %v2254, %v2286
        %v2307 = vcombine.low %v2263, %v2295
        %v2308 = vcombine.high %v2263, %v2295
        %v2309 = vcombine.low %v2270, %v2302
        %v2310 = vcombine.high %v2270, %v2302
        %v2311 = vcombine.low %v2008, %v2016
        %v2312 = vcombine.high %v2008, %v2016
        %v2314 = vunpack.c.l.s4 1983009808
        %v2315 = vunpack.c.0.s8 %v2314
        %v2316 = vlaneseq
        %v2317 = vshrl.u32 %v2316, 7
        %v2318 = vsub.s32 %v2315, %v2317
        %v2319 = vrot.slane %v2311, %v2318
        %v2321 = vunpack.c.l.s4 1983009808
        %v2322 = vunpack.c.0.s8 %v2321
        %v2323 = vlaneseq
        %v2324 = vshrl.u32 %v2323, 7
        %v2325 = vsub.s32 %v2322, %v2324
        %v2326 = vrot.slane %v2312, %v2325
        %v2327 = vcombine.low %v2012, %v2020
        %v2328 = vcombine.high %v2012, %v2020
        %v2330 = vunpack.c.l.s4 1983009808
        %v2331 = vunpack.c.0.s8 %v2330
        %v2332 = vlaneseq
        %v2333 = vshrl.u32 %v2332, 7
        %v2334 = vsub.s32 %v2331, %v2333
        %v2335 = vrot.slane %v2327, %v2334
        %v2337 = vunpack.c.l.s4 1983009808
        %v2338 = vunpack.c.0.s8 %v2337
        %v2339 = vlaneseq
        %v2340 = vshrl.u32 %v2339, 7
        %v2341 = vsub.s32 %v2338, %v2340
        %v2342 = vrot.slane %v2328, %v2341
        %v2343 = vcombine.low %v2024, %v2032
        %v2344 = vcombine.high %v2024, %v2032
        %v2346 = vunpack.c.l.s4 1983009808
        %v2347 = vunpack.c.0.s8 %v2346
        %v2348 = vlaneseq
        %v2349 = vshrl.u32 %v2348, 7
        %v2350 = vsub.s32 %v2347, %v2349
        %v2351 = vrot.slane %v2343, %v2350
        %v2353 = vunpack.c.l.s4 1983009808
        %v2354 = vunpack.c.0.s8 %v2353
        %v2355 = vlaneseq
        %v2356 = vshrl.u32 %v2355, 7
        %v2357 = vsub.s32 %v2354, %v2356
        %v2358 = vrot.slane %v2344, %v2357
        %v2359 = vcombine.low %v2028, %v2036
        %v2360 = vcombine.high %v2028, %v2036
        %v2362 = vunpack.c.l.s4 1983009808
        %v2363 = vunpack.c.0.s8 %v2362
        %v2364 = vlaneseq
        %v2365 = vshrl.u32 %v2364, 7
        %v2366 = vsub.s32 %v2363, %v2365
        %v2367 = vrot.slane %v2359, %v2366
        %v2369 = vunpack.c.l.s4 1983009808
        %v2370 = vunpack.c.0.s8 %v2369
        %v2371 = vlaneseq
        %v2372 = vshrl.u32 %v2371, 7
        %v2373 = vsub.s32 %v2370, %v2372
        %v2374 = vrot.slane %v2360, %v2373
        %v2375 = vcombine.low %v2319, %v2335
        %v2376 = vcombine.high %v2319, %v2335
        %v2378 = vunpack.c.l.s4 1934713408
        %v2379 = vunpack.c.0.s8 %v2378
        %v2380 = vlaneseq
        %v2381 = vshrl.u32 %v2380, 7
        %v2382 = vsub.s32 %v2379, %v2381
        %v2383 = vrot.slane %v2375, %v2382
        %v2385 = vunpack.c.l.s4 1934713408
        %v2386 = vunpack.c.0.s8 %v2385
        %v2387 = vlaneseq
        %v2388 = vshrl.u32 %v2387, 7
        %v2389 = vsub.s32 %v2386, %v2388
        %v2390 = vrot.slane %v2376, %v2389
        %v2391 = vcombine.low %v2326, %v2342
        %v2392 = vcombine.high %v2326, %v2342
        %v2394 = vunpack.c.l.s4 1934713408
        %v2395 = vunpack.c.0.s8 %v2394
        %v2396 = vlaneseq
        %v2397 = vshrl.u32 %v2396, 7
        %v2398 = vsub.s32 %v2395, %v2397
        %v2399 = vrot.slane %v2391, %v2398
        %v2401 = vunpack.c.l.s4 1934713408
        %v2402 = vunpack.c.0.s8 %v2401
        %v2403 = vlaneseq
        %v2404 = vshrl.u32 %v2403, 7
        %v2405 = vsub.s32 %v2402, %v2404
        %v2406 = vrot.slane %v2392, %v2405
        %v2407 = vcombine.low %v2351, %v2367
        %v2408 = vcombine.high %v2351, %v2367
        %v2410 = vunpack.c.l.s4 1934713408
        %v2411 = vunpack.c.0.s8 %v2410
        %v2412 = vlaneseq
        %v2413 = vshrl.u32 %v2412, 7
        %v2414 = vsub.s32 %v2411, %v2413
        %v2415 = vrot.slane %v2407, %v2414
        %v2417 = vunpack.c.l.s4 1934713408
        %v2418 = vunpack.c.0.s8 %v2417
        %v2419 = vlaneseq
        %v2420 = vshrl.u32 %v2419, 7
        %v2421 = vsub.s32 %v2418, %v2420
        %v2422 = vrot.slane %v2408, %v2421
        %v2423 = vcombine.low %v2358, %v2374
        %v2424 = vcombine.high %v2358, %v2374
        %v2426 = vunpack.c.l.s4 1934713408
        %v2427 = vunpack.c.0.s8 %v2426
        %v2428 = vlaneseq
        %v2429 = vshrl.u32 %v2428, 7
        %v2430 = vsub.s32 %v2427, %v2429
        %v2431 = vrot.slane %v2423, %v2430
        %v2433 = vunpack.c.l.s4 1934713408
        %v2434 = vunpack.c.0.s8 %v2433
        %v2435 = vlaneseq
        %v2436 = vshrl.u32 %v2435, 7
        %v2437 = vsub.s32 %v2434, %v2436
        %v2438 = vrot.slane %v2424, %v2437
        %v2439 = vcombine.low %v2383, %v2415
        %v2440 = vcombine.high %v2383, %v2415
        %v2441 = vcombine.low %v2390, %v2422
        %v2442 = vcombine.high %v2390, %v2422
        %v2443 = vcombine.low %v2399, %v2431
        %v2444 = vcombine.high %v2399, %v2431
        %v2445 = vcombine.low %v2406, %v2438
        %v2446 = vcombine.high %v2406, %v2438
        %v2447 = vcombine.low %v2010, %v2018
        %v2448 = vcombine.high %v2010, %v2018
        %v2450 = vunpack.c.l.s4 1983009808
        %v2451 = vunpack.c.0.s8 %v2450
        %v2452 = vlaneseq
        %v2453 = vshrl.u32 %v2452, 7
        %v2454 = vsub.s32 %v2451, %v2453
        %v2455 = vrot.slane %v2447, %v2454
        %v2457 = vunpack.c.l.s4 1983009808
        %v2458 = vunpack.c.0.s8 %v2457
        %v2459 = vlaneseq
        %v2460 = vshrl.u32 %v2459, 7
        %v2461 = vsub.s32 %v2458, %v2460
        %v2462 = vrot.slane %v2448, %v2461
        %v2463 = vcombine.low %v2014, %v2022
        %v2464 = vcombine.high %v2014, %v2022
        %v2466 = vunpack.c.l.s4 1983009808
        %v2467 = vunpack.c.0.s8 %v2466
        %v2468 = vlaneseq
        %v2469 = vshrl.u32 %v2468, 7
        %v2470 = vsub.s32 %v2467, %v2469
        %v2471 = vrot.slane %v2463, %v2470
        %v2473 = vunpack.c.l.s4 1983009808
        %v2474 = vunpack.c.0.s8 %v2473
        %v2475 = vlaneseq
        %v2476 = vshrl.u32 %v2475, 7
        %v2477 = vsub.s32 %v2474, %v2476
        %v2478 = vrot.slane %v2464, %v2477
        %v2479 = vcombine.low %v2026, %v2034
        %v2480 = vcombine.high %v2026, %v2034
        %v2482 = vunpack.c.l.s4 1983009808
        %v2483 = vunpack.c.0.s8 %v2482
        %v2484 = vlaneseq
        %v2485 = vshrl.u32 %v2484, 7
        %v2486 = vsub.s32 %v2483, %v2485
        %v2487 = vrot.slane %v2479, %v2486
        %v2489 = vunpack.c.l.s4 1983009808
        %v2490 = vunpack.c.0.s8 %v2489
        %v2491 = vlaneseq
        %v2492 = vshrl.u32 %v2491, 7
        %v2493 = vsub.s32 %v2490, %v2492
        %v2494 = vrot.slane %v2480, %v2493
        %v2495 = vcombine.low %v2030, %v2038
        %v2496 = vcombine.high %v2030, %v2038
        %v2498 = vunpack.c.l.s4 1983009808
        %v2499 = vunpack.c.0.s8 %v2498
        %v2500 = vlaneseq
        %v2501 = vshrl.u32 %v2500, 7
        %v2502 = vsub.s32 %v2499, %v2501
        %v2503 = vrot.slane %v2495, %v2502
        %v2505 = vunpack.c.l.s4 1983009808
        %v2506 = vunpack.c.0.s8 %v2505
        %v2507 = vlaneseq
        %v2508 = vshrl.u32 %v2507, 7
        %v2509 = vsub.s32 %v2506, %v2508
        %v2510 = vrot.slane %v2496, %v2509
        %v2511 = vcombine.low %v2455, %v2471
        %v2512 = vcombine.high %v2455, %v2471
        %v2514 = vunpack.c.l.s4 1934713408
        %v2515 = vunpack.c.0.s8 %v2514
        %v2516 = vlaneseq
        %v2517 = vshrl.u32 %v2516, 7
        %v2518 = vsub.s32 %v2515, %v2517
        %v2519 = vrot.slane %v2511, %v2518
        %v2521 = vunpack.c.l.s4 1934713408
        %v2522 = vunpack.c.0.s8 %v2521
        %v2523 = vlaneseq
        %v2524 = vshrl.u32 %v2523, 7
        %v2525 = vsub.s32 %v2522, %v2524
        %v2526 = vrot.slane %v2512, %v2525
        %v2527 = vcombine.low %v2462, %v2478
        %v2528 = vcombine.high %v2462, %v2478
        %v2530 = vunpack.c.l.s4 1934713408
        %v2531 = vunpack.c.0.s8 %v2530
        %v2532 = vlaneseq
        %v2533 = vshrl.u32 %v2532, 7
        %v2534 = vsub.s32 %v2531, %v2533
        %v2535 = vrot.slane %v2527, %v2534
        %v2537 = vunpack.c.l.s4 1934713408
        %v2538 = vunpack.c.0.s8 %v2537
        %v2539 = vlaneseq
        %v2540 = vshrl.u32 %v2539, 7
        %v2541 = vsub.s32 %v2538, %v2540
        %v2542 = vrot.slane %v2528, %v2541
        %v2543 = vcombine.low %v2487, %v2503
        %v2544 = vcombine.high %v2487, %v2503
        %v2546 = vunpack.c.l.s4 1934713408
        %v2547 = vunpack.c.0.s8 %v2546
        %v2548 = vlaneseq
        %v2549 = vshrl.u32 %v2548, 7
        %v2550 = vsub.s32 %v2547, %v2549
        %v2551 = vrot.slane %v2543, %v2550
        %v2553 = vunpack.c.l.s4 1934713408
        %v2554 = vunpack.c.0.s8 %v2553
        %v2555 = vlaneseq
        %v2556 = vshrl.u32 %v2555, 7
        %v2557 = vsub.s32 %v2554, %v2556
        %v2558 = vrot.slane %v2544, %v2557
        %v2559 = vcombine.low %v2494, %v2510
        %v2560 = vcombine.high %v2494, %v2510
        %v2562 = vunpack.c.l.s4 1934713408
        %v2563 = vunpack.c.0.s8 %v2562
        %v2564 = vlaneseq
        %v2565 = vshrl.u32 %v2564, 7
        %v2566 = vsub.s32 %v2563, %v2565
        %v2567 = vrot.slane %v2559, %v2566
        %v2569 = vunpack.c.l.s4 1934713408
        %v2570 = vunpack.c.0.s8 %v2569
        %v2571 = vlaneseq
        %v2572 = vshrl.u32 %v2571, 7
        %v2573 = vsub.s32 %v2570, %v2572
        %v2574 = vrot.slane %v2560, %v2573
        %v2575 = vcombine.low %v2519, %v2551
        %v2576 = vcombine.high %v2519, %v2551
        %v2577 = vcombine.low %v2526, %v2558
        %v2578 = vcombine.high %v2526, %v2558
        %v2579 = vcombine.low %v2535, %v2567
        %v2580 = vcombine.high %v2535, %v2567
        %v2581 = vcombine.low %v2542, %v2574
        %v2582 = vcombine.high %v2542, %v2574
        %v2585 = vpack.i.b16 %v2303, %v2167
        %v2586 = vshrl.u32 %v2167, 16
        %v2587 = vshrl.u32 %v2303, 16
        %v2588 = vpack.i.b16 %v2587, %v2586
        %v2591 = vpack.i.b16 %v2304, %v2168
        %v2592 = vshrl.u32 %v2168, 16
        %v2593 = vshrl.u32 %v2304, 16
        %v2594 = vpack.i.b16 %v2593, %v2592
        %v2597 = vpack.i.b16 %v2305, %v2169
        %v2598 = vshrl.u32 %v2169, 16
        %v2599 = vshrl.u32 %v2305, 16
        %v2600 = vpack.i.b16 %v2599, %v2598
        %v2603 = vpack.i.b16 %v2306, %v2170
        %v2604 = vshrl.u32 %v2170, 16
        %v2605 = vshrl.u32 %v2306, 16
        %v2606 = vpack.i.b16 %v2605, %v2604
        %v2609 = vpack.i.b16 %v2307, %v2171
        %v2610 = vshrl.u32 %v2171, 16
        %v2611 = vshrl.u32 %v2307, 16
        %v2612 = vpack.i.b16 %v2611, %v2610
        %v2615 = vpack.i.b16 %v2308, %v2172
        %v2616 = vshrl.u32 %v2172, 16
        %v2617 = vshrl.u32 %v2308, 16
        %v2618 = vpack.i.b16 %v2617, %v2616
        %v2621 = vpack.i.b16 %v2309, %v2173
        %v2622 = vshrl.u32 %v2173, 16
        %v2623 = vshrl.u32 %v2309, 16
        %v2624 = vpack.i.b16 %v2623, %v2622
        %v2627 = vpack.i.b16 %v2310, %v2174
        %v2628 = vshrl.u32 %v2174, 16
        %v2629 = vshrl.u32 %v2310, 16
        %v2630 = vpack.i.b16 %v2629, %v2628
        %v2633 = vpack.i.b16 %v2575, %v2439
        %v2634 = vshrl.u32 %v2439, 16
        %v2635 = vshrl.u32 %v2575, 16
        %v2636 = vpack.i.b16 %v2635, %v2634
        %v2639 = vpack.i.b16 %v2576, %v2440
        %v2640 = vshrl.u32 %v2440, 16
        %v2641 = vshrl.u32 %v2576, 16
        %v2642 = vpack.i.b16 %v2641, %v2640
        %v2645 = vpack.i.b16 %v2577, %v2441
        %v2646 = vshrl.u32 %v2441, 16
        %v2647 = vshrl.u32 %v2577, 16
        %v2648 = vpack.i.b16 %v2647, %v2646
        %v2651 = vpack.i.b16 %v2578, %v2442
        %v2652 = vshrl.u32 %v2442, 16
        %v2653 = vshrl.u32 %v2578, 16
        %v2654 = vpack.i.b16 %v2653, %v2652
        %v2657 = vpack.i.b16 %v2579, %v2443
        %v2658 = vshrl.u32 %v2443, 16
        %v2659 = vshrl.u32 %v2579, 16
        %v2660 = vpack.i.b16 %v2659, %v2658
        %v2663 = vpack.i.b16 %v2580, %v2444
        %v2664 = vshrl.u32 %v2444, 16
        %v2665 = vshrl.u32 %v2580, 16
        %v2666 = vpack.i.b16 %v2665, %v2664
        %v2669 = vpack.i.b16 %v2581, %v2445
        %v2670 = vshrl.u32 %v2445, 16
        %v2671 = vshrl.u32 %v2581, 16
        %v2672 = vpack.i.b16 %v2671, %v2670
        %v2675 = vpack.i.b16 %v2582, %v2446
        %v2676 = vshrl.u32 %v2446, 16
        %v2677 = vshrl.u32 %v2582, 16
        %v2678 = vpack.i.b16 %v2677, %v2676
        %2679 = vrot.lane.b32.xlu0 %v2588, 32
        %v2680 = vpop.permute.xlu0 %2679
        %2681 = vrot.lane.b32.xlu0 %v2591, 64
        %v2682 = vpop.permute.xlu0 %2681
        %2683 = vrot.lane.b32.xlu0 %v2594, 96
        %v2684 = vpop.permute.xlu0 %2683
        %2685 = vrot.lane.b32.xlu0 %v2600, 32
        %v2686 = vpop.permute.xlu0 %2685
        %2687 = vrot.lane.b32.xlu0 %v2603, 64
        %v2688 = vpop.permute.xlu0 %2687
        %2689 = vrot.lane.b32.xlu0 %v2606, 96
        %v2690 = vpop.permute.xlu0 %2689
        %2691 = vrot.lane.b32.xlu0 %v2612, 32
        %v2692 = vpop.permute.xlu0 %2691
        %2693 = vrot.lane.b32.xlu0 %v2615, 64
        %v2694 = vpop.permute.xlu0 %2693
        %2695 = vrot.lane.b32.xlu0 %v2618, 96
        %v2696 = vpop.permute.xlu0 %2695
        %2697 = vrot.lane.b32.xlu0 %v2624, 32
        %v2698 = vpop.permute.xlu0 %2697
        %2699 = vrot.lane.b32.xlu0 %v2627, 64
        %v2700 = vpop.permute.xlu0 %2699
        %2701 = vrot.lane.b32.xlu0 %v2630, 96
        %v2702 = vpop.permute.xlu0 %2701
        %2703 = vrot.lane.b32.xlu0 %v2636, 32
        %v2704 = vpop.permute.xlu0 %2703
        %2705 = vrot.lane.b32.xlu0 %v2639, 64
        %v2706 = vpop.permute.xlu0 %2705
        %2707 = vrot.lane.b32.xlu0 %v2642, 96
        %v2708 = vpop.permute.xlu0 %2707
        %2709 = vrot.lane.b32.xlu0 %v2648, 32
        %v2710 = vpop.permute.xlu0 %2709
        %2711 = vrot.lane.b32.xlu0 %v2651, 64
        %v2712 = vpop.permute.xlu0 %2711
        %2713 = vrot.lane.b32.xlu0 %v2654, 96
        %v2714 = vpop.permute.xlu0 %2713
        %2715 = vrot.lane.b32.xlu0 %v2660, 32
        %v2716 = vpop.permute.xlu0 %2715
        %2717 = vrot.lane.b32.xlu0 %v2663, 64
        %v2718 = vpop.permute.xlu0 %2717
        %2719 = vrot.lane.b32.xlu0 %v2666, 96
        %v2720 = vpop.permute.xlu0 %2719
        %2721 = vrot.lane.b32.xlu0 %v2672, 32
        %v2722 = vpop.permute.xlu0 %2721
        %2723 = vrot.lane.b32.xlu0 %v2675, 64
        %v2724 = vpop.permute.xlu0 %2723
        %2725 = vrot.lane.b32.xlu0 %v2678, 96
        %v2726 = vpop.permute.xlu0 %2725
        %v2729 = vsel %vm597, %v2585, %v2680
        %vm2730 = vcmask 523264
        %v2732 = vsel %vm2730, %v2729, %v2682
        %vm2733 = vcmask 785408
        %v2735 = vsel %vm2733, %v2732, %v2684
        %v2739 = vsel %vm597, %v2597, %v2686
        %v2741 = vsel %vm2730, %v2739, %v2688
        %v2743 = vsel %vm2733, %v2741, %v2690
        %v2747 = vsel %vm597, %v2609, %v2692
        %v2749 = vsel %vm2730, %v2747, %v2694
        %v2751 = vsel %vm2733, %v2749, %v2696
        %v2755 = vsel %vm597, %v2621, %v2698
        %v2757 = vsel %vm2730, %v2755, %v2700
        %v2759 = vsel %vm2733, %v2757, %v2702
        %v2763 = vsel %vm597, %v2633, %v2704
        %v2765 = vsel %vm2730, %v2763, %v2706
        %v2767 = vsel %vm2733, %v2765, %v2708
        %v2771 = vsel %vm597, %v2645, %v2710
        %v2773 = vsel %vm2730, %v2771, %v2712
        %v2775 = vsel %vm2733, %v2773, %v2714
        %v2779 = vsel %vm597, %v2657, %v2716
        %v2781 = vsel %vm2730, %v2779, %v2718
        %v2783 = vsel %vm2733, %v2781, %v2720
        %v2787 = vsel %vm597, %v2669, %v2722
        %v2789 = vsel %vm2730, %v2787, %v2724
        %v2791 = vsel %vm2733, %v2789, %v2726
        %v2793 = vld [vmem:[%s5] sm:$0xf]
        %v2794 = vld [vmem:[%s5 + $0x4] sm:$0xf]
        %v2795 = vld [vmem:[%s5 + $0x8] sm:$0xf]
        %v2796 = vld [vmem:[%s5 + $0xc] sm:$0xf]
        %v2801 = vunpack.c.l.b16 %v2793
        %v2802 = vunpack.c.l.b16 %v2794
        %v2803 = vunpack.c.l.b16 %v2795
        %v2804 = vunpack.c.l.b16 %v2796
        %v2805 = vpack.c.b16 %v2802, %v2801
        %v2806 = vpack.c.b16 %v2804, %v2803
        %v2808 = vsel %vm976, %v2805, 0
        %v2811 = vsel %vm976, %v2806, 0
        %2813 = vmatprep.subr.bf16.mxu0 0
        %2814 = vmatpush1.bf16.msra.mxu0 0
        %2815 = vmatprep.subr.bf16.mxu0 0
        %2816 = vmatpush1.bf16.msra.mxu0 0
        %2817 = vmatprep.subr.bf16.mxu0 0
        %2818 = vmatpush1.bf16.msra.mxu0 0
        %2819 = vmatprep.subr.bf16.mxu0 0
        %2820 = vmatpush1.bf16.msra.mxu0 0
        %2821 = vmatprep.subr.bf16.mxu0 0
        %2822 = vmatpush1.bf16.msra.mxu0 0
        %2823 = vmatprep.subr.bf16.mxu0 0
        %2824 = vmatpush1.bf16.msra.mxu0 0
        %2825 = vmatprep.subr.bf16.mxu0 0
        %2826 = vmatpush1.bf16.msra.mxu0 0
        %2827 = vmatprep.subr.bf16.mxu0 %v2743
        %2828 = vmatpush1.bf16.msra.mxu0 %v2735
        %2829 = vmatprep.subr.bf16.mxu0 0
        %2830 = vmatpush2.bf16.msra.mxu0 0
        %2831 = vmatprep.subr.bf16.mxu0 0
        %2832 = vmatpush2.bf16.msra.mxu0 0
        %2833 = vmatprep.subr.bf16.mxu0 0
        %2834 = vmatpush2.bf16.msra.mxu0 0
        %2835 = vmatprep.subr.bf16.mxu0 0
        %2836 = vmatpush2.bf16.msra.mxu0 0
        %2837 = vmatprep.subr.bf16.mxu0 0
        %2838 = vmatpush2.bf16.msra.mxu0 0
        %2839 = vmatprep.subr.bf16.mxu0 0
        %2840 = vmatpush2.bf16.msra.mxu0 0
        %2841 = vmatprep.subr.bf16.mxu0 0
        %2842 = vmatpush2.bf16.msra.mxu0 0
        %2843 = vmatprep.subr.bf16.mxu0 0
        %2844 = vmatpush2.bf16.msra.mxu0 0
        %2845 = vmatprep.mubr.bf16.mxu0 0
        %2846 = vmatmul.mubr.bf16.gmra.mxu0 %v2808
        %v2847 = vpop.f32.mrf.mxu0
        %v2848 = vadd.f32 0.0, %v2847
        %v2849 = vpop.f32.mrf.mxu0
        %v2850 = vadd.f32 0.0, %v2849
        %v2851 = vpop.f32.mrf.mxu0
        %v2852 = vadd.f32 0.0, %v2851
        %v2853 = vpop.f32.mrf.mxu0
        %v2854 = vadd.f32 0.0, %v2853
        %2855 = vmatprep.mubr.bf16.mxu0 0
        %2856 = vmatmul.mubr.bf16.gmra.mxu0 %v2811
        %v2857 = vpop.f32.mrf.mxu0
        %v2858 = vadd.f32 0.0, %v2857
        %v2859 = vpop.f32.mrf.mxu0
        %v2860 = vadd.f32 0.0, %v2859
        %v2861 = vpop.f32.mrf.mxu0
        %v2862 = vadd.f32 0.0, %v2861
        %v2863 = vpop.f32.mrf.mxu0
        %v2864 = vadd.f32 0.0, %v2863
        %2865 = vdwg.mxu0
        %2866 = vmatprep.subr.bf16.mxu0 0
        %2867 = vmatpush1.bf16.msra.mxu0 0
        %2868 = vmatprep.subr.bf16.mxu0 0
        %2869 = vmatpush1.bf16.msra.mxu0 0
        %2870 = vmatprep.subr.bf16.mxu0 0
        %2871 = vmatpush1.bf16.msra.mxu0 0
        %2872 = vmatprep.subr.bf16.mxu0 0
        %2873 = vmatpush1.bf16.msra.mxu0 0
        %2874 = vmatprep.subr.bf16.mxu0 0
        %2875 = vmatpush1.bf16.msra.mxu0 0
        %2876 = vmatprep.subr.bf16.mxu0 0
        %2877 = vmatpush1.bf16.msra.mxu0 0
        %2878 = vmatprep.subr.bf16.mxu0 0
        %2879 = vmatpush1.bf16.msra.mxu0 0
        %2880 = vmatprep.subr.bf16.mxu0 %v2759
        %2881 = vmatpush1.bf16.msra.mxu0 %v2751
        %2882 = vmatprep.subr.bf16.mxu0 0
        %2883 = vmatpush2.bf16.msra.mxu0 0
        %2884 = vmatprep.subr.bf16.mxu0 0
        %2885 = vmatpush2.bf16.msra.mxu0 0
        %2886 = vmatprep.subr.bf16.mxu0 0
        %2887 = vmatpush2.bf16.msra.mxu0 0
        %2888 = vmatprep.subr.bf16.mxu0 0
        %2889 = vmatpush2.bf16.msra.mxu0 0
        %2890 = vmatprep.subr.bf16.mxu0 0
        %2891 = vmatpush2.bf16.msra.mxu0 0
        %2892 = vmatprep.subr.bf16.mxu0 0
        %2893 = vmatpush2.bf16.msra.mxu0 0
        %2894 = vmatprep.subr.bf16.mxu0 0
        %2895 = vmatpush2.bf16.msra.mxu0 0
        %2896 = vmatprep.subr.bf16.mxu0 0
        %2897 = vmatpush2.bf16.msra.mxu0 0
        %2898 = vmatprep.mubr.bf16.mxu0 0
        %2899 = vmatmul.mubr.bf16.gmra.mxu0 %v2808
        %v2900 = vpop.f32.mrf.mxu0
        %v2901 = vadd.f32 0.0, %v2900
        %v2902 = vpop.f32.mrf.mxu0
        %v2903 = vadd.f32 0.0, %v2902
        %v2904 = vpop.f32.mrf.mxu0
        %v2905 = vadd.f32 0.0, %v2904
        %v2906 = vpop.f32.mrf.mxu0
        %v2907 = vadd.f32 0.0, %v2906
        %2908 = vmatprep.mubr.bf16.mxu0 0
        %2909 = vmatmul.mubr.bf16.gmra.mxu0 %v2811
        %v2910 = vpop.f32.mrf.mxu0
        %v2911 = vadd.f32 0.0, %v2910
        %v2912 = vpop.f32.mrf.mxu0
        %v2913 = vadd.f32 0.0, %v2912
        %v2914 = vpop.f32.mrf.mxu0
        %v2915 = vadd.f32 0.0, %v2914
        %v2916 = vpop.f32.mrf.mxu0
        %v2917 = vadd.f32 0.0, %v2916
        %2918 = vdwg.mxu0
        %2919 = vmatprep.subr.bf16.mxu0 0
        %2920 = vmatpush1.bf16.msra.mxu0 0
        %2921 = vmatprep.subr.bf16.mxu0 0
        %2922 = vmatpush1.bf16.msra.mxu0 0
        %2923 = vmatprep.subr.bf16.mxu0 0
        %2924 = vmatpush1.bf16.msra.mxu0 0
        %2925 = vmatprep.subr.bf16.mxu0 0
        %2926 = vmatpush1.bf16.msra.mxu0 0
        %2927 = vmatprep.subr.bf16.mxu0 0
        %2928 = vmatpush1.bf16.msra.mxu0 0
        %2929 = vmatprep.subr.bf16.mxu0 0
        %2930 = vmatpush1.bf16.msra.mxu0 0
        %2931 = vmatprep.subr.bf16.mxu0 0
        %2932 = vmatpush1.bf16.msra.mxu0 0
        %2933 = vmatprep.subr.bf16.mxu0 %v2775
        %2934 = vmatpush1.bf16.msra.mxu0 %v2767
        %2935 = vmatprep.subr.bf16.mxu0 0
        %2936 = vmatpush2.bf16.msra.mxu0 0
        %2937 = vmatprep.subr.bf16.mxu0 0
        %2938 = vmatpush2.bf16.msra.mxu0 0
        %2939 = vmatprep.subr.bf16.mxu0 0
        %2940 = vmatpush2.bf16.msra.mxu0 0
        %2941 = vmatprep.subr.bf16.mxu0 0
        %2942 = vmatpush2.bf16.msra.mxu0 0
        %2943 = vmatprep.subr.bf16.mxu0 0
        %2944 = vmatpush2.bf16.msra.mxu0 0
        %2945 = vmatprep.subr.bf16.mxu0 0
        %2946 = vmatpush2.bf16.msra.mxu0 0
        %2947 = vmatprep.subr.bf16.mxu0 0
        %2948 = vmatpush2.bf16.msra.mxu0 0
        %2949 = vmatprep.subr.bf16.mxu0 0
        %2950 = vmatpush2.bf16.msra.mxu0 0
        %2951 = vmatprep.mubr.bf16.mxu0 0
        %2952 = vmatmul.mubr.bf16.gmra.mxu0 %v2808
        %v2953 = vpop.f32.mrf.mxu0
        %v2954 = vadd.f32 0.0, %v2953
        %v2955 = vpop.f32.mrf.mxu0
        %v2956 = vadd.f32 0.0, %v2955
        %v2957 = vpop.f32.mrf.mxu0
        %v2958 = vadd.f32 0.0, %v2957
        %v2959 = vpop.f32.mrf.mxu0
        %v2960 = vadd.f32 0.0, %v2959
        %2961 = vmatprep.mubr.bf16.mxu0 0
        %2962 = vmatmul.mubr.bf16.gmra.mxu0 %v2811
        %v2963 = vpop.f32.mrf.mxu0
        %v2964 = vadd.f32 0.0, %v2963
        %v2965 = vpop.f32.mrf.mxu0
        %v2966 = vadd.f32 0.0, %v2965
        %v2967 = vpop.f32.mrf.mxu0
        %v2968 = vadd.f32 0.0, %v2967
        %v2969 = vpop.f32.mrf.mxu0
        %v2970 = vadd.f32 0.0, %v2969
        %2971 = vdwg.mxu0
        %2972 = vmatprep.subr.bf16.mxu0 0
        %2973 = vmatpush1.bf16.msra.mxu0 0
        %2974 = vmatprep.subr.bf16.mxu0 0
        %2975 = vmatpush1.bf16.msra.mxu0 0
        %2976 = vmatprep.subr.bf16.mxu0 0
        %2977 = vmatpush1.bf16.msra.mxu0 0
        %2978 = vmatprep.subr.bf16.mxu0 0
        %2979 = vmatpush1.bf16.msra.mxu0 0
        %2980 = vmatprep.subr.bf16.mxu0 0
        %2981 = vmatpush1.bf16.msra.mxu0 0
        %2982 = vmatprep.subr.bf16.mxu0 0
        %2983 = vmatpush1.bf16.msra.mxu0 0
        %2984 = vmatprep.subr.bf16.mxu0 0
        %2985 = vmatpush1.bf16.msra.mxu0 0
        %2986 = vmatprep.subr.bf16.mxu0 %v2791
        %2987 = vmatpush1.bf16.msra.mxu0 %v2783
        %2988 = vmatprep.subr.bf16.mxu0 0
        %2989 = vmatpush2.bf16.msra.mxu0 0
        %2990 = vmatprep.subr.bf16.mxu0 0
        %2991 = vmatpush2.bf16.msra.mxu0 0
        %2992 = vmatprep.subr.bf16.mxu0 0
        %2993 = vmatpush2.bf16.msra.mxu0 0
        %2994 = vmatprep.subr.bf16.mxu0 0
        %2995 = vmatpush2.bf16.msra.mxu0 0
        %2996 = vmatprep.subr.bf16.mxu0 0
        %2997 = vmatpush2.bf16.msra.mxu0 0
        %2998 = vmatprep.subr.bf16.mxu0 0
        %2999 = vmatpush2.bf16.msra.mxu0 0
        %3000 = vmatprep.subr.bf16.mxu0 0
        %3001 = vmatpush2.bf16.msra.mxu0 0
        %3002 = vmatprep.subr.bf16.mxu0 0
        %3003 = vmatpush2.bf16.msra.mxu0 0
        %3004 = vmatprep.mubr.bf16.mxu0 0
        %3005 = vmatmul.mubr.bf16.gmra.mxu0 %v2808
        %v3006 = vpop.f32.mrf.mxu0
        %v3007 = vadd.f32 0.0, %v3006
        %v3008 = vpop.f32.mrf.mxu0
        %v3009 = vadd.f32 0.0, %v3008
        %v3010 = vpop.f32.mrf.mxu0
        %v3011 = vadd.f32 0.0, %v3010
        %v3012 = vpop.f32.mrf.mxu0
        %v3013 = vadd.f32 0.0, %v3012
        %3014 = vmatprep.mubr.bf16.mxu0 0
        %3015 = vmatmul.mubr.bf16.gmra.mxu0 %v2811
        %v3016 = vpop.f32.mrf.mxu0
        %v3017 = vadd.f32 0.0, %v3016
        %v3018 = vpop.f32.mrf.mxu0
        %v3019 = vadd.f32 0.0, %v3018
        %v3020 = vpop.f32.mrf.mxu0
        %v3021 = vadd.f32 0.0, %v3020
        %v3022 = vpop.f32.mrf.mxu0
        %v3023 = vadd.f32 0.0, %v3022
        %3024 = vdwg.mxu0
        %v3025 = vpack.c.bf16 %v2852, %v2848
        %v3026 = vpack.c.bf16 %v2854, %v2850
        %v3027 = vpack.c.bf16 %v2905, %v2901
        %v3028 = vpack.c.bf16 %v2907, %v2903
        %v3029 = vpack.c.bf16 %v2958, %v2954
        %v3030 = vpack.c.bf16 %v2960, %v2956
        %v3031 = vpack.c.bf16 %v3011, %v3007
        %v3032 = vpack.c.bf16 %v3013, %v3009
        %v3033 = vpack.c.bf16 %v2862, %v2858
        %v3034 = vpack.c.bf16 %v2864, %v2860
        %v3035 = vpack.c.bf16 %v2915, %v2911
        %v3036 = vpack.c.bf16 %v2917, %v2913
        %v3037 = vpack.c.bf16 %v2968, %v2964
        %v3038 = vpack.c.bf16 %v2970, %v2966
        %v3039 = vpack.c.bf16 %v3021, %v3017
        %v3040 = vpack.c.bf16 %v3023, %v3019
        %v3057 = vunpack.c.l.b16 %v3025
        %v3058 = vunpack.c.l.b16 %v3026
        %v3059 = vunpack.c.l.b16 %v3027
        %v3060 = vunpack.c.l.b16 %v3028
        %v3061 = vunpack.c.l.b16 %v3029
        %v3062 = vunpack.c.l.b16 %v3030
        %v3063 = vunpack.c.l.b16 %v3031
        %v3064 = vunpack.c.l.b16 %v3032
        %v3065 = vunpack.c.h.b16 %v3025
        %v3066 = vunpack.c.h.b16 %v3026
        %v3067 = vunpack.c.h.b16 %v3027
        %v3068 = vunpack.c.h.b16 %v3028
        %v3069 = vunpack.c.h.b16 %v3029
        %v3070 = vunpack.c.h.b16 %v3030
        %v3071 = vunpack.c.h.b16 %v3031
        %v3072 = vunpack.c.h.b16 %v3032
        %v3073 = vunpack.c.l.b16 %v3033
        %v3074 = vunpack.c.l.b16 %v3034
        %v3075 = vunpack.c.l.b16 %v3035
        %v3076 = vunpack.c.l.b16 %v3036
        %v3077 = vunpack.c.l.b16 %v3037
        %v3078 = vunpack.c.l.b16 %v3038
        %v3079 = vunpack.c.l.b16 %v3039
        %v3080 = vunpack.c.l.b16 %v3040
        %v3081 = vunpack.c.h.b16 %v3033
        %v3082 = vunpack.c.h.b16 %v3034
        %v3083 = vunpack.c.h.b16 %v3035
        %v3084 = vunpack.c.h.b16 %v3036
        %v3085 = vunpack.c.h.b16 %v3037
        %v3086 = vunpack.c.h.b16 %v3038
        %v3087 = vunpack.c.h.b16 %v3039
        %v3088 = vunpack.c.h.b16 %v3040
        %v3089 = vpack.c.b16 %v3058, %v3057
        %v3090 = vpack.c.b16 %v3060, %v3059
        %v3091 = vpack.c.b16 %v3062, %v3061
        %v3092 = vpack.c.b16 %v3064, %v3063
        %v3093 = vpack.c.b16 %v3066, %v3065
        %v3094 = vpack.c.b16 %v3068, %v3067
        %v3095 = vpack.c.b16 %v3070, %v3069
        %v3096 = vpack.c.b16 %v3072, %v3071
        %v3097 = vpack.c.b16 %v3074, %v3073
        %v3098 = vpack.c.b16 %v3076, %v3075
        %v3099 = vpack.c.b16 %v3078, %v3077
        %v3100 = vpack.c.b16 %v3080, %v3079
        %v3101 = vpack.c.b16 %v3082, %v3081
        %v3102 = vpack.c.b16 %v3084, %v3083
        %v3103 = vpack.c.b16 %v3086, %v3085
        %v3104 = vpack.c.b16 %v3088, %v3087
        %3121 = vst [vmem:[%s244] sm:$0xff] %v3089
        %3122 = vst [vmem:[%s244 + $0x8] sm:$0xff] %v3090
        %3123 = vst [vmem:[%s244 + $0x10] sm:$0xff] %v3091
        %3124 = vst [vmem:[%s244 + $0x18] sm:$0xff] %v3092
        %3125 = vst [vmem:[%s244 + $0x20] sm:$0xff] %v3093
        %3126 = vst [vmem:[%s244 + $0x28] sm:$0xff] %v3094
        %3127 = vst [vmem:[%s244 + $0x30] sm:$0xff] %v3095
        %3128 = vst [vmem:[%s244 + $0x38] sm:$0xff] %v3096
        %3129 = vst [vmem:[%s244 + $0x40] sm:$0xff] %v3097
        %3130 = vst [vmem:[%s244 + $0x48] sm:$0xff] %v3098
        %3131 = vst [vmem:[%s244 + $0x50] sm:$0xff] %v3099
        %3132 = vst [vmem:[%s244 + $0x58] sm:$0xff] %v3100
        %3133 = vst [vmem:[%s244 + $0x60] sm:$0xff] %v3101
        %3134 = vst [vmem:[%s244 + $0x68] sm:$0xff] %v3102
        %3135 = vst [vmem:[%s244 + $0x70] sm:$0xff] %v3103
        %3136 = vst [vmem:[%s244 + $0x78] sm:$0xff] %v3104
        %s3137 = sand.u32 %s159, 1
        %s3138 = scalar_lea.sflag [#allocation3], %s3137
        %s3139 = sand.u32 %s159, 1
        %s3140 = smul.addr %s3139, 128
        %s3141 = scalar_lea.vmem [#allocation2], %s3140
        // Predicated region
        $region45: #{conv_gn_relu.1} parent=43 // pred_check
          %p3142 = pneg %p169
        $region46: #{conv_gn_relu.1} parent=43 // pred_check_branch
          %3144 = sbr.rel (%p3142) target = $region48
        $region47: #{conv_gn_relu.1} parent=43 // pred_region
          %s3146 = ssub.s32 2048, 2048
          %3147 = vsyncadd %s3138, %s3146
          %s3148 = smul.addr %s20, 32
          %s3149 = smul.addr %s3148, 64
          %s3150 = scalar_lea.hbm %s6, %s3149
          %s3151 = sshll.u32 %s3141, 4
          %s3152 = int_to_ptr.vmem [resolvable:$true] %s3151
          %3157 = dma.vmem_to_hbm [thread:$0]  %s3152, 2048, %s3150, %s3138, 512, 512, 32
        $region48: #{conv_gn_relu.1} parent=43 // pred_fallthru
          _
      $region44: #{conv_gn_relu.1} parent=5 // pred_fallthru
        _
      %p3158 = scmp.le.s32.totalorder 2, %s15
      // Predicated region
      $region49: #{conv_gn_relu.1} parent=5 // pred_check
        %p3159 = pneg %p3158
      $region50: #{conv_gn_relu.1} parent=5 // pred_check_branch
        %3161 = sbr.rel (%p3159) target = $region52
      $region51: #{conv_gn_relu.1} parent=5 // pred_region
        %s3162 = ssub.s32 %s15, 2
        // Predicated region
        $region53: #{conv_gn_relu.1} parent=51 // pred_check
          %p3163 = pneg %p175
        $region54: #{conv_gn_relu.1} parent=51 // pred_check_branch
          %3165 = sbr.rel (%p3163) target = $region56
        $region55: #{conv_gn_relu.1} parent=51 // pred_region
          %s3166 = sand.u32 %s160, 1
          %s3167 = scalar_lea.sflag [#allocation3], %s3166
          %s3168 = sand.u32 %s160, 1
          %s3169 = smul.addr %s3168, 128
          %s3170 = scalar_lea.vmem [#allocation2], %s3169
          %3171 = dma.done %s3167, 2048
        $region56: #{conv_gn_relu.1} parent=51 // pred_fallthru
          _
      $region52: #{conv_gn_relu.1} parent=5 // pred_fallthru
        _
    $region6: #{conv_gn_relu.1} parent=1 // loop_footer
      %s19 = sadd.s32 1, %s15
    $region7: #{conv_gn_relu.1} parent=1 // loop_footer_branch
      %14 = sbr.rel target = $region3
    $region8: #{conv_gn_relu.1} parent=1 // loop_exit
      _
    %3172 = vsyncpa [#allocation3], 1
    %s3173 = scalar_lea.sflag [#allocation3], 1
    %3174 = vsyncpa %s3173, 1

</llo_original>
